<compile_context>
chip_gen: v7x
topology: tpu7x:2x2x1
jax: 0.10.0
libtpu: 0.0.40
codegen_flags: <defaults>
</compile_context>

<pallas_src>
import functools

import jax
import jax.numpy as jnp
from jax import lax
from jax.experimental import pallas as pl
from jax.experimental.pallas import tpu as pltpu


def _offensive_attention_kernel(
    hate_ref, sent_ref,
    w1a_ref, w1b_ref, b1_ref,
    w2_ref, b2_ref,
    w3_ref, b3_ref,
    w4_ref, b4_ref,
    w5_ref, b5_ref,          # w5 passed pre-transposed as a (1, hidden4) row
    w6_ref, b6_ref,
    out_ref,                 # (Bt, 1, 2L): [probs | logits] per batch element
    *, s_real,
):
    f32, bf16 = jnp.float32, jnp.bfloat16
    Bt, S_pad, H = hate_ref.shape
    rows = Bt * S_pad
    h4d = w5_ref.shape[1]
    L = w6_ref.shape[1]
    relu = lambda x: jnp.maximum(x, 0.0)          # self.activation == ReLU

    # f32 block loads; cast to bf16 on the VPU (no wrapper-side HBM round trip).
    hate_f32 = hate_ref[...]                      # (Bt, S_pad, H)
    # Layout-free leading-dim merge (wrapper guarantees S_pad % 8 == 0); the
    # dense chain then runs as single (Bt*S_pad, .) MXU matmuls.
    hate2d = hate_f32.reshape(rows, H).astype(bf16)
    sent2d = sent_ref[...].reshape(rows, H).astype(bf16)

    # dense_layer1 on concat([hate, sent], -1) == hate @ W1[:H] + sent @ W1[H:]
    h1 = relu(jnp.dot(hate2d, w1a_ref[...], preferred_element_type=f32)
              + jnp.dot(sent2d, w1b_ref[...], preferred_element_type=f32)
              + b1_ref[...])
    h2 = relu(jnp.dot(h1.astype(bf16), w2_ref[...], preferred_element_type=f32)
              + b2_ref[...])
    h3 = relu(jnp.dot(h2.astype(bf16), w3_ref[...], preferred_element_type=f32)
              + b3_ref[...])
    h4 = relu(jnp.dot(h3.astype(bf16), w4_ref[...], preferred_element_type=f32)
              + b4_ref[...])                                     # (rows, h4d) f32

    # dense_layer5 with the transpose folded into the contraction:
    # (Bt, 1, h4d) . (Bt, S_pad, h4d) -> (Bt, 1, S_pad) lane-major energies.
    h4_3d = h4.reshape(Bt, S_pad, h4d).astype(bf16)              # layout-free split
    w5_b = jnp.broadcast_to(w5_ref[...], (Bt, 1, h4d))
    energies = jnp.einsum('bqf,bsf->bqs', w5_b, h4_3d,
                          preferred_element_type=f32) + b5_ref[...]

    # Exclude [CLS] (token 0) and wrapper sublane padding (pos >= s_real):
    # equivalent to the torch [:, 1:, :] slice.
    pos = lax.broadcasted_iota(jnp.int32, (Bt, 1, S_pad), 2)
    energies = jnp.where((pos == 0) | (pos >= s_real), -1e30, energies)

    # Attention softmax over the sequence (lane) axis, all Bt rows at once.
    m = jnp.max(energies, axis=-1, keepdims=True)
    p = jnp.exp(energies - m)
    alphas = p * pl.reciprocal(jnp.sum(p, axis=-1, keepdims=True), approx=True)

    # context_vectors = alphas @ hate_seq  (single batched MXU pass, f32).
    ctx = jnp.einsum('bqs,bsh->bqh', alphas, hate_f32,
                     preferred_element_type=f32)                 # (Bt, 1, H)

    # dense_layer6 (f32 for accuracy; tiny matmul).
    w6_b = jnp.broadcast_to(w6_ref[...], (Bt, H, L))
    logits = jnp.einsum('bqh,bhl->bql', ctx, w6_b,
                        preferred_element_type=f32) + b6_ref[...]  # (Bt, 1, L)

    # Final label softmax — exact division (essentially free at this size).
    lm = jnp.max(logits, axis=-1, keepdims=True)
    lp = jnp.exp(logits - lm)
    probs = lp / jnp.sum(lp, axis=-1, keepdims=True)

    # Single merged lane-contiguous store per grid step.
    out_ref[...] = jnp.concatenate([probs, logits], axis=-1)     # (Bt, 1, 2L)


def _largest_divisor_leq(n, cap):
    cap = max(1, min(cap, n))
    for d in range(cap, 0, -1):
        if n % d == 0:
            return d
    return 1


def _tensorcores_per_chip():
    """2 for dual-TensorCore / megacore chips (v7x, v4, v5p); else 1."""
    try:
        kind = jax.devices()[0].device_kind.lower()
    except Exception:
        return 1
    return 2 if any(t in kind for t in ("v7", "7x", "v4", "v5p")) else 1


def _step_vmem_bytes(Bt, S_pad, H, hdims):
    rows = Bt * S_pad
    seq_in = 2 * 2 * rows * H * 4          # two f32 seq inputs, double-buffered
    casts = 2 * rows * H * 2               # in-kernel bf16 copies of the seqs
    inter = rows * sum(hdims) * 6          # f32 h1..h4 + their bf16 copies
    return seq_in + casts + inter


_VMEM_LIMIT_BYTES = 32 * 1024 * 1024       # safe scoped limit on v5e/v6e/v7x
_VMEM_STEP_BUDGET = 16 * 1024 * 1024       # per-step working-set target


def _pick_batch_tile(B, S_pad, H, hdims):
    """Batch elements folded into one grid step.

    Single-TC chips (v5e/v6e): extra grid steps are a purely serial loop, so
    fold as much of the batch as the VMEM budget allows (usually all of it).
    Dual-TC chips (v7x / megacore): keep >= 2 parallel steps so both cores
    get work.
    """
    bt = 1
    for d in range(B, 0, -1):
        if B % d == 0 and _step_vmem_bytes(d, S_pad, H, hdims) <= _VMEM_STEP_BUDGET:
            bt = d
            break
    if _tensorcores_per_chip() >= 2 and B >= 2:
        bt = min(bt, _largest_divisor_leq(B, B // 2))
    return bt


def offensive_network_forward(hate_last, sent_last, params, *, batch_tile=None):
    """hate_last / sent_last: (B, S, H) float32 last hidden states."""
    B, S, H = hate_last.shape
    (w1, b1, w2, b2, w3, b3, w4, b4, w5, b5, w6, b6) = params
    h1d, h2d, h3d, h4d = w1.shape[1], w2.shape[1], w3.shape[1], w4.shape[1]
    L = w6.shape[1]

    # Pad the sequence axis to a sublane multiple so the per-step leading-dim
    # merge ((Bt, S, H) -> (Bt*S, H)) is layout-free; pad tokens are masked out
    # of the attention softmax inside the kernel (together with [CLS]).
    S_pad = -(-S // 8) * 8
    if S_pad != S:
        pad = ((0, 0), (0, S_pad - S), (0, 0))
        hate_last = jnp.pad(hate_last, pad)
        sent_last = jnp.pad(sent_last, pad)

    if batch_tile is None:
        batch_tile = _pick_batch_tile(B, S_pad, H, (h1d, h2d, h3d, h4d))
    Bt = batch_tile
    assert B % Bt == 0, "batch_tile must divide batch size"
    grid = (B // Bt,)

    bf = lambda a: a.astype(jnp.bfloat16)
    f32 = lambda a: a.astype(jnp.float32)

    # Weights/biases are tiny; cast/reshape them host-side.  The big (B,S,H)
    # sequence tensors are passed in their original f32 dtype and cast to bf16
    # inside the kernel (single HBM read, no wrapper round trip).
    w1a, w1b = bf(w1[:H]), bf(w1[H:])      # split W1 so concat never happens
    weights = (
        w1a, w1b, f32(b1).reshape(1, -1),
        bf(w2), f32(b2).reshape(1, -1),
        bf(w3), f32(b3).reshape(1, -1),
        bf(w4), f32(b4).reshape(1, -1),
        bf(w5).reshape(1, -1), f32(b5).reshape(1, 1),   # (1, hidden4) row
        f32(w6), f32(b6).reshape(1, -1),
    )

    seq_spec = pl.BlockSpec((Bt, S_pad, H), lambda i: (i, 0, 0))
    # (Bt, 1, 2L) block: last two dims equal the full array dims, so the store
    # stays (8,128)-rule safe for any Bt; the singleton dim is squeezed below.
    out_spec = pl.BlockSpec((Bt, 1, 2 * L), lambda i: (i, 0, 0))
    out_shape = jax.ShapeDtypeStruct((B, 1, 2 * L), jnp.float32)

    rows_total = B * S_pad
    itemsize = hate_last.dtype.itemsize
    cost = pl.CostEstimate(
        flops=(2 * rows_total * (2 * H * h1d + h1d * h2d + h2d * h3d
                                 + h3d * h4d + h4d)
               + 2 * B * (S_pad * H + H * L)),
        transcendentals=B * (S_pad + L + 1),
        bytes_accessed=(2 * rows_total * H * itemsize
                        + sum(int(a.size) * a.dtype.itemsize for a in weights)
                        + B * 2 * L * 4),
    )

    kernel = functools.partial(_offensive_attention_kernel, s_real=S)

    def build(single_buffer_weights):
        kw = {"pipeline_mode": pl.Buffered(1)} if single_buffer_weights else {}

        def full_spec(a):
            return pl.BlockSpec(a.shape, lambda i, _nd=a.ndim: (0,) * _nd, **kw)

        return pl.pallas_call(
            kernel,
            out_shape=out_shape,
            grid=grid,
            in_specs=[seq_spec, seq_spec] + [full_spec(a) for a in weights],
            out_specs=out_spec,
            compiler_params=pltpu.CompilerParams(
                dimension_semantics=("parallel",),
                vmem_limit_bytes=_VMEM_LIMIT_BYTES),
            cost_estimate=cost,
        )

    try:
        # Grid-invariant weights need only a single VMEM buffer (frees VMEM
        # headroom — matters most on v7x's 64 MiB).
        out = build(True)(hate_last, sent_last, *weights)
    except Exception:
        # Fallback if this Pallas version rejects Buffered(1) block specs.
        out = build(False)(hate_last, sent_last, *weights)

    probs = out[:, 0, :L]
    logits = out[:, 0, L:]
    # torch: output.squeeze(), logits.squeeze()
    return jnp.squeeze(probs), jnp.squeeze(logits)


def _reference_forward(hate_last, sent_last, params):
    """Pure-JAX f32 reference of the torch forward (sanity check)."""
    (w1, b1, w2, b2, w3, b3, w4, b4, w5, b5, w6, b6) = params
    hate_seq = hate_last[:, 1:, :]
    sent_seq = sent_last[:, 1:, :]
    joint = jnp.concatenate([hate_seq, sent_seq], axis=-1)
    act = lambda x: jnp.maximum(x, 0.0)
    h1 = act(joint @ w1 + b1)
    h2 = act(h1 @ w2 + b2)
    h3 = act(h2 @ w3 + b3)
    h4 = act(h3 @ w4 + b4)
    energies = h4 @ w5 + b5                              # (B, T, 1)
    alphas = jax.nn.softmax(energies, axis=1)
    ctx = jnp.einsum('btl,bth->blh', alphas, hate_seq)   # (B, 1, H)
    logits = ctx @ w6 + b6                               # (B, 1, L)
    out = jax.nn.softmax(logits, axis=-1)
    return jnp.squeeze(out), jnp.squeeze(logits)


if __name__ == "__main__":
    def run_case(key, B, S, H, hiddens, L):
        h1d, h2d, h3d, h4d = hiddens
        ks = jax.random.split(key, 14)

        def init_linear(kw, kb, fan_in, fan_out):
            lim = 1.0 / jnp.sqrt(fan_in)
            w = jax.random.uniform(kw, (fan_in, fan_out), jnp.float32, -lim, lim)
            b = jax.random.uniform(kb, (fan_out,), jnp.float32, -lim, lim)
            return w, b

        w1, b1 = init_linear(ks[0], ks[1], 2 * H, h1d)
        w2, b2 = init_linear(ks[2], ks[3], h1d, h2d)
        w3, b3 = init_linear(ks[4], ks[5], h2d, h3d)
        w4, b4 = init_linear(ks[6], ks[7], h3d, h4d)
        w5, b5 = init_linear(ks[8], ks[9], h4d, 1)
        w6, b6 = init_linear(ks[10], ks[11], H, L)
        params = (w1, b1, w2, b2, w3, b3, w4, b4, w5, b5, w6, b6)

        hate_last = jax.random.normal(ks[12], (B, S, H), jnp.float32)
        sent_last = jax.random.normal(ks[13], (B, S, H), jnp.float32)

        probs, logits = offensive_network_forward(hate_last, sent_last, params)
        probs, logits = jax.block_until_ready((probs, logits))

        ref_probs, ref_logits = _reference_forward(hate_last, sent_last, params)
        # bf16 dense chain vs. a pure-f32 reference -> ~1e-2 level tolerance.
        assert jnp.allclose(probs, ref_probs, atol=3e-2, rtol=3e-2), "probs mismatch"
        assert jnp.allclose(logits, ref_logits, atol=3e-2, rtol=3e-2), "logits mismatch"

    key = jax.random.PRNGKey(0)
    k1, k2 = jax.random.split(key)
    # Case 1: S=9 not sublane-aligned -> wrapper pads to 16; pads are masked.
    run_case(k1, B=2, S=9, H=32, hiddens=(64, 32, 32, 16), L=4)
    # Case 2: 8-aligned sequence exercises full batch folding.
    run_case(k2, B=4, S=16, H=32, hiddens=(64, 32, 32, 16), L=4)

    print("KERNEL_OK")
</pallas_src>

<mosaic_0001>
module attributes {stable_mosaic.version = 11 : i64} {
  func.func @_offensive_attention_kernel(%arg0: i32, %arg1: memref<2x16x32xf32, #tpu.memory_space<vmem>>, %arg2: memref<2x16x32xf32, #tpu.memory_space<vmem>>, %arg3: memref<32x64xbf16, #tpu.memory_space<vmem>>, %arg4: memref<32x64xbf16, #tpu.memory_space<vmem>>, %arg5: memref<1x64xf32, #tpu.memory_space<vmem>>, %arg6: memref<64x32xbf16, #tpu.memory_space<vmem>>, %arg7: memref<1x32xf32, #tpu.memory_space<vmem>>, %arg8: memref<32x32xbf16, #tpu.memory_space<vmem>>, %arg9: memref<1x32xf32, #tpu.memory_space<vmem>>, %arg10: memref<32x16xbf16, #tpu.memory_space<vmem>>, %arg11: memref<1x16xf32, #tpu.memory_space<vmem>>, %arg12: memref<1x16xbf16, #tpu.memory_space<vmem>>, %arg13: memref<1x1xf32, #tpu.memory_space<vmem>>, %arg14: memref<32x4xf32, #tpu.memory_space<vmem>>, %arg15: memref<1x4xf32, #tpu.memory_space<vmem>>, %arg16: memref<2x1x8xf32, #tpu.memory_space<vmem>>) attributes {dimension_semantics = [#tpu.dimension_semantics<parallel>], iteration_bounds = array<i64: 1>, scalar_prefetch = 0 : i64, scratch_operands = 0 : i64, tpu.core_type = #tpu.core_type<tc>, window_params = [{transform_indices = @transform_0, window_bounds = array<i64: 2, 16, 32>}, {transform_indices = @transform_1, window_bounds = array<i64: 2, 16, 32>}, {pipeline_mode = #tpu.pipeline_mode<synchronous>, transform_indices = @transform_2, window_bounds = array<i64: 32, 64>}, {pipeline_mode = #tpu.pipeline_mode<synchronous>, transform_indices = @transform_3, window_bounds = array<i64: 32, 64>}, {pipeline_mode = #tpu.pipeline_mode<synchronous>, transform_indices = @transform_4, window_bounds = array<i64: 1, 64>}, {pipeline_mode = #tpu.pipeline_mode<synchronous>, transform_indices = @transform_5, window_bounds = array<i64: 64, 32>}, {pipeline_mode = #tpu.pipeline_mode<synchronous>, transform_indices = @transform_6, window_bounds = array<i64: 1, 32>}, {pipeline_mode = #tpu.pipeline_mode<synchronous>, transform_indices = @transform_7, window_bounds = array<i64: 32, 32>}, {pipeline_mode = #tpu.pipeline_mode<synchronous>, transform_indices = @transform_8, window_bounds = array<i64: 1, 32>}, {pipeline_mode = #tpu.pipeline_mode<synchronous>, transform_indices = @transform_9, window_bounds = array<i64: 32, 16>}, {pipeline_mode = #tpu.pipeline_mode<synchronous>, transform_indices = @transform_10, window_bounds = array<i64: 1, 16>}, {pipeline_mode = #tpu.pipeline_mode<synchronous>, transform_indices = @transform_11, window_bounds = array<i64: 1, 16>}, {pipeline_mode = #tpu.pipeline_mode<synchronous>, transform_indices = @transform_12, window_bounds = array<i64: 1, 1>}, {pipeline_mode = #tpu.pipeline_mode<synchronous>, transform_indices = @transform_13, window_bounds = array<i64: 32, 4>}, {pipeline_mode = #tpu.pipeline_mode<synchronous>, transform_indices = @transform_14, window_bounds = array<i64: 1, 4>}, {transform_indices = @transform_15, window_bounds = array<i64: 2, 1, 8>}]} {
    %c0 = arith.constant 0 : index
    %c0_0 = arith.constant 0 : index
    %c0_1 = arith.constant 0 : index
    %0 = vector.load %arg1[%c0, %c0_0, %c0_1] : memref<2x16x32xf32, #tpu.memory_space<vmem>>, vector<2x16x32xf32>
    %1 = vector.shape_cast %0 : vector<2x16x32xf32> to vector<32x32xf32>
    %2 = arith.truncf %1 : vector<32x32xf32> to vector<32x32xbf16>
    %c0_2 = arith.constant 0 : index
    %c0_3 = arith.constant 0 : index
    %c0_4 = arith.constant 0 : index
    %3 = vector.load %arg2[%c0_2, %c0_3, %c0_4] : memref<2x16x32xf32, #tpu.memory_space<vmem>>, vector<2x16x32xf32>
    %4 = vector.shape_cast %3 : vector<2x16x32xf32> to vector<32x32xf32>
    %5 = arith.truncf %4 : vector<32x32xf32> to vector<32x32xbf16>
    %c0_5 = arith.constant 0 : index
    %c0_6 = arith.constant 0 : index
    %6 = vector.load %arg3[%c0_5, %c0_6] : memref<32x64xbf16, #tpu.memory_space<vmem>>, vector<32x64xbf16>
    %cst = arith.constant dense<0.000000e+00> : vector<32x64xf32>
    %7 = tpu.matmul %2, %6, %cst {dimension_numbers = #tpu.dot_dimension_numbers<[1], [0], [0], [1], [0, 0, 1, 1], [], []>} : vector<32x32xbf16>, vector<32x64xbf16>, vector<32x64xf32> -> vector<32x64xf32>
    %c0_7 = arith.constant 0 : index
    %c0_8 = arith.constant 0 : index
    %8 = vector.load %arg4[%c0_7, %c0_8] : memref<32x64xbf16, #tpu.memory_space<vmem>>, vector<32x64xbf16>
    %cst_9 = arith.constant dense<0.000000e+00> : vector<32x64xf32>
    %9 = tpu.matmul %5, %8, %cst_9 {dimension_numbers = #tpu.dot_dimension_numbers<[1], [0], [0], [1], [0, 0, 1, 1], [], []>} : vector<32x32xbf16>, vector<32x64xbf16>, vector<32x64xf32> -> vector<32x64xf32>
    %10 = arith.addf %7, %9 : vector<32x64xf32>
    %c0_10 = arith.constant 0 : index
    %c0_11 = arith.constant 0 : index
    %11 = vector.load %arg5[%c0_10, %c0_11] : memref<1x64xf32, #tpu.memory_space<vmem>>, vector<1x64xf32>
    %12 = vector.broadcast %11 : vector<1x64xf32> to vector<32x64xf32>
    %13 = arith.addf %10, %12 : vector<32x64xf32>
    %cst_12 = arith.constant 0.000000e+00 : f32
    %14 = vector.broadcast %cst_12 : f32 to vector<32x64xf32>
    %15 = arith.maximumf %13, %14 : vector<32x64xf32>
    %16 = arith.truncf %15 : vector<32x64xf32> to vector<32x64xbf16>
    %c0_13 = arith.constant 0 : index
    %c0_14 = arith.constant 0 : index
    %17 = vector.load %arg6[%c0_13, %c0_14] : memref<64x32xbf16, #tpu.memory_space<vmem>>, vector<64x32xbf16>
    %cst_15 = arith.constant dense<0.000000e+00> : vector<32x32xf32>
    %18 = tpu.matmul %16, %17, %cst_15 {dimension_numbers = #tpu.dot_dimension_numbers<[1], [0], [0], [1], [0, 0, 1, 1], [], []>} : vector<32x64xbf16>, vector<64x32xbf16>, vector<32x32xf32> -> vector<32x32xf32>
    %c0_16 = arith.constant 0 : index
    %c0_17 = arith.constant 0 : index
    %19 = vector.load %arg7[%c0_16, %c0_17] : memref<1x32xf32, #tpu.memory_space<vmem>>, vector<1x32xf32>
    %20 = vector.broadcast %19 : vector<1x32xf32> to vector<32x32xf32>
    %21 = arith.addf %18, %20 : vector<32x32xf32>
    %cst_18 = arith.constant 0.000000e+00 : f32
    %22 = vector.broadcast %cst_18 : f32 to vector<32x32xf32>
    %23 = arith.maximumf %21, %22 : vector<32x32xf32>
    %24 = arith.truncf %23 : vector<32x32xf32> to vector<32x32xbf16>
    %c0_19 = arith.constant 0 : index
    %c0_20 = arith.constant 0 : index
    %25 = vector.load %arg8[%c0_19, %c0_20] : memref<32x32xbf16, #tpu.memory_space<vmem>>, vector<32x32xbf16>
    %cst_21 = arith.constant dense<0.000000e+00> : vector<32x32xf32>
    %26 = tpu.matmul %24, %25, %cst_21 {dimension_numbers = #tpu.dot_dimension_numbers<[1], [0], [0], [1], [0, 0, 1, 1], [], []>} : vector<32x32xbf16>, vector<32x32xbf16>, vector<32x32xf32> -> vector<32x32xf32>
    %c0_22 = arith.constant 0 : index
    %c0_23 = arith.constant 0 : index
    %27 = vector.load %arg9[%c0_22, %c0_23] : memref<1x32xf32, #tpu.memory_space<vmem>>, vector<1x32xf32>
    %28 = vector.broadcast %27 : vector<1x32xf32> to vector<32x32xf32>
    %29 = arith.addf %26, %28 : vector<32x32xf32>
    %cst_24 = arith.constant 0.000000e+00 : f32
    %30 = vector.broadcast %cst_24 : f32 to vector<32x32xf32>
    %31 = arith.maximumf %29, %30 : vector<32x32xf32>
    %32 = arith.truncf %31 : vector<32x32xf32> to vector<32x32xbf16>
    %c0_25 = arith.constant 0 : index
    %c0_26 = arith.constant 0 : index
    %33 = vector.load %arg10[%c0_25, %c0_26] : memref<32x16xbf16, #tpu.memory_space<vmem>>, vector<32x16xbf16>
    %cst_27 = arith.constant dense<0.000000e+00> : vector<32x16xf32>
    %34 = tpu.matmul %32, %33, %cst_27 {dimension_numbers = #tpu.dot_dimension_numbers<[1], [0], [0], [1], [0, 0, 1, 1], [], []>} : vector<32x32xbf16>, vector<32x16xbf16>, vector<32x16xf32> -> vector<32x16xf32>
    %c0_28 = arith.constant 0 : index
    %c0_29 = arith.constant 0 : index
    %35 = vector.load %arg11[%c0_28, %c0_29] : memref<1x16xf32, #tpu.memory_space<vmem>>, vector<1x16xf32>
    %36 = vector.broadcast %35 : vector<1x16xf32> to vector<32x16xf32>
    %37 = arith.addf %34, %36 : vector<32x16xf32>
    %cst_30 = arith.constant 0.000000e+00 : f32
    %38 = vector.broadcast %cst_30 : f32 to vector<32x16xf32>
    %39 = arith.maximumf %37, %38 : vector<32x16xf32>
    %40 = vector.shape_cast %39 : vector<32x16xf32> to vector<2x16x16xf32>
    %41 = arith.truncf %40 : vector<2x16x16xf32> to vector<2x16x16xbf16>
    %c0_31 = arith.constant 0 : index
    %c0_32 = arith.constant 0 : index
    %42 = vector.load %arg12[%c0_31, %c0_32] : memref<1x16xbf16, #tpu.memory_space<vmem>>, vector<1x16xbf16>
    %43 = vector.shape_cast %42 : vector<1x16xbf16> to vector<1x1x16xbf16>
    %44 = vector.broadcast %43 : vector<1x1x16xbf16> to vector<2x1x16xbf16>
    "tpu.trace_start"() <{level = 10 : i32, message = "bqf,bsf->bqs"}> : () -> ()
    %cst_33 = arith.constant dense<0.000000e+00> : vector<2x1x16xf32>
    %45 = tpu.matmul %44, %41, %cst_33 {dimension_numbers = #tpu.dot_dimension_numbers<[2], [2], [1], [1], [0, 0, 0, 1, 1, 1], [0], [0]>} : vector<2x1x16xbf16>, vector<2x16x16xbf16>, vector<2x1x16xf32> -> vector<2x1x16xf32>
    "tpu.trace_stop"() : () -> ()
    %c0_34 = arith.constant 0 : index
    %c0_35 = arith.constant 0 : index
    %46 = vector.load %arg13[%c0_34, %c0_35] : memref<1x1xf32, #tpu.memory_space<vmem>>, vector<1x1xf32>
    %47 = vector.shape_cast %46 : vector<1x1xf32> to vector<1x1x1xf32>
    %48 = vector.broadcast %47 : vector<1x1x1xf32> to vector<2x1x16xf32>
    %49 = arith.addf %45, %48 : vector<2x1x16xf32>
    %50 = tpu.iota {dimensions = array<i32: 2>} : vector<2x1x16xi32>
    %c0_i32 = arith.constant 0 : i32
    %51 = vector.broadcast %c0_i32 : i32 to vector<2x1x16xi32>
    %52 = arith.cmpi eq, %50, %51 : vector<2x1x16xi32>
    %c9_i32 = arith.constant 9 : i32
    %53 = vector.broadcast %c9_i32 : i32 to vector<2x1x16xi32>
    %54 = arith.cmpi sge, %50, %53 : vector<2x1x16xi32>
    %55 = arith.ori %52, %54 : vector<2x1x16xi1>
    %cst_36 = arith.constant -1.000000e+30 : f32
    %56 = vector.broadcast %cst_36 : f32 to vector<2x1x16xf32>
    %57 = arith.select %55, %56, %49 : vector<2x1x16xi1>, vector<2x1x16xf32>
    %cst_37 = arith.constant dense<0xFF800000> : vector<2x1xf32>
    %58 = vector.multi_reduction <maximumf>, %57, %cst_37 [2] : vector<2x1x16xf32> to vector<2x1xf32>
    %59 = vector.shape_cast %58 : vector<2x1xf32> to vector<2x1x1xf32>
    %60 = vector.broadcast %59 : vector<2x1x1xf32> to vector<2x1x16xf32>
    %61 = arith.subf %57, %60 : vector<2x1x16xf32>
    %62 = math.exp %61 : vector<2x1x16xf32>
    %cst_38 = arith.constant dense<0.000000e+00> : vector<2x1xf32>
    %63 = vector.multi_reduction <add>, %62, %cst_38 [2] : vector<2x1x16xf32> to vector<2x1xf32>
    %64 = vector.shape_cast %63 : vector<2x1xf32> to vector<2x1x1xf32>
    %65 = tpu.reciprocal %64 {approx = true} : vector<2x1x1xf32> -> vector<2x1x1xf32>
    %66 = vector.broadcast %65 : vector<2x1x1xf32> to vector<2x1x16xf32>
    %67 = arith.mulf %62, %66 : vector<2x1x16xf32>
    "tpu.trace_start"() <{level = 10 : i32, message = "bqs,bsh->bqh"}> : () -> ()
    %cst_39 = arith.constant dense<0.000000e+00> : vector<2x1x32xf32>
    %68 = tpu.matmul %67, %0, %cst_39 {dimension_numbers = #tpu.dot_dimension_numbers<[2], [1], [1], [2], [0, 0, 0, 1, 1, 2], [0], [0]>} : vector<2x1x16xf32>, vector<2x16x32xf32>, vector<2x1x32xf32> -> vector<2x1x32xf32>
    "tpu.trace_stop"() : () -> ()
    %c0_40 = arith.constant 0 : index
    %c0_41 = arith.constant 0 : index
    %69 = vector.load %arg14[%c0_40, %c0_41] : memref<32x4xf32, #tpu.memory_space<vmem>>, vector<32x4xf32>
    %70 = vector.shape_cast %69 : vector<32x4xf32> to vector<1x32x4xf32>
    %71 = vector.broadcast %70 : vector<1x32x4xf32> to vector<2x32x4xf32>
    "tpu.trace_start"() <{level = 10 : i32, message = "bqh,bhl->bql"}> : () -> ()
    %cst_42 = arith.constant dense<0.000000e+00> : vector<2x1x4xf32>
    %72 = tpu.matmul %68, %71, %cst_42 {dimension_numbers = #tpu.dot_dimension_numbers<[2], [1], [1], [2], [0, 0, 0, 1, 1, 2], [0], [0]>} : vector<2x1x32xf32>, vector<2x32x4xf32>, vector<2x1x4xf32> -> vector<2x1x4xf32>
    "tpu.trace_stop"() : () -> ()
    %c0_43 = arith.constant 0 : index
    %c0_44 = arith.constant 0 : index
    %73 = vector.load %arg15[%c0_43, %c0_44] : memref<1x4xf32, #tpu.memory_space<vmem>>, vector<1x4xf32>
    %74 = vector.shape_cast %73 : vector<1x4xf32> to vector<1x1x4xf32>
    %75 = vector.broadcast %74 : vector<1x1x4xf32> to vector<2x1x4xf32>
    %76 = arith.addf %72, %75 : vector<2x1x4xf32>
    %cst_45 = arith.constant dense<0xFF800000> : vector<2x1xf32>
    %77 = vector.multi_reduction <maximumf>, %76, %cst_45 [2] : vector<2x1x4xf32> to vector<2x1xf32>
    %78 = vector.shape_cast %77 : vector<2x1xf32> to vector<2x1x1xf32>
    %79 = vector.broadcast %78 : vector<2x1x1xf32> to vector<2x1x4xf32>
    %80 = arith.subf %76, %79 : vector<2x1x4xf32>
    %81 = math.exp %80 : vector<2x1x4xf32>
    %cst_46 = arith.constant dense<0.000000e+00> : vector<2x1xf32>
    %82 = vector.multi_reduction <add>, %81, %cst_46 [2] : vector<2x1x4xf32> to vector<2x1xf32>
    %83 = vector.shape_cast %82 : vector<2x1xf32> to vector<2x1x1xf32>
    %84 = vector.broadcast %83 : vector<2x1x1xf32> to vector<2x1x4xf32>
    %85 = arith.divf %81, %84 : vector<2x1x4xf32>
    %86 = tpu.concatenate %85, %76 in 2 : vector<2x1x4xf32>, vector<2x1x4xf32> -> vector<2x1x8xf32>
    %c0_47 = arith.constant 0 : index
    %c0_48 = arith.constant 0 : index
    %c0_49 = arith.constant 0 : index
    %87 = vector.load %arg16[%c0_47, %c0_48, %c0_49] : memref<2x1x8xf32, #tpu.memory_space<vmem>>, vector<2x1x8xf32>
    tpu.vector_store %arg16[%c0_47, %c0_48, %c0_49], %86 {strides = array<i32>} : memref<2x1x8xf32, #tpu.memory_space<vmem>>, vector<2x1x8xf32>,
    return
  }
  func.func @transform_0(%arg0: i32) -> (i32, i32, i32) {
    %c0_i32 = arith.constant 0 : i32
    %c0_i32_0 = arith.constant 0 : i32
    %c0_i32_1 = arith.constant 0 : i32
    return %arg0, %c0_i32, %c0_i32_0 : i32, i32, i32
  }
  func.func @transform_1(%arg0: i32) -> (i32, i32, i32) {
    %c0_i32 = arith.constant 0 : i32
    %c0_i32_0 = arith.constant 0 : i32
    %c0_i32_1 = arith.constant 0 : i32
    return %arg0, %c0_i32, %c0_i32_0 : i32, i32, i32
  }
  func.func @transform_2(%arg0: i32) -> (i32, i32) {
    %c0_i32 = arith.constant 0 : i32
    %c0_i32_0 = arith.constant 0 : i32
    %c0_i32_1 = arith.constant 0 : i32
    return %c0_i32, %c0_i32_0 : i32, i32
  }
  func.func @transform_3(%arg0: i32) -> (i32, i32) {
    %c0_i32 = arith.constant 0 : i32
    %c0_i32_0 = arith.constant 0 : i32
    %c0_i32_1 = arith.constant 0 : i32
    return %c0_i32, %c0_i32_0 : i32, i32
  }
  func.func @transform_4(%arg0: i32) -> (i32, i32) {
    %c0_i32 = arith.constant 0 : i32
    %c0_i32_0 = arith.constant 0 : i32
    %c0_i32_1 = arith.constant 0 : i32
    return %c0_i32, %c0_i32_0 : i32, i32
  }
  func.func @transform_5(%arg0: i32) -> (i32, i32) {
    %c0_i32 = arith.constant 0 : i32
    %c0_i32_0 = arith.constant 0 : i32
    %c0_i32_1 = arith.constant 0 : i32
    return %c0_i32, %c0_i32_0 : i32, i32
  }
  func.func @transform_6(%arg0: i32) -> (i32, i32) {
    %c0_i32 = arith.constant 0 : i32
    %c0_i32_0 = arith.constant 0 : i32
    %c0_i32_1 = arith.constant 0 : i32
    return %c0_i32, %c0_i32_0 : i32, i32
  }
  func.func @transform_7(%arg0: i32) -> (i32, i32) {
    %c0_i32 = arith.constant 0 : i32
    %c0_i32_0 = arith.constant 0 : i32
    %c0_i32_1 = arith.constant 0 : i32
    return %c0_i32, %c0_i32_0 : i32, i32
  }
  func.func @transform_8(%arg0: i32) -> (i32, i32) {
    %c0_i32 = arith.constant 0 : i32
    %c0_i32_0 = arith.constant 0 : i32
    %c0_i32_1 = arith.constant 0 : i32
    return %c0_i32, %c0_i32_0 : i32, i32
  }
  func.func @transform_9(%arg0: i32) -> (i32, i32) {
    %c0_i32 = arith.constant 0 : i32
    %c0_i32_0 = arith.constant 0 : i32
    %c0_i32_1 = arith.constant 0 : i32
    return %c0_i32, %c0_i32_0 : i32, i32
  }
  func.func @transform_10(%arg0: i32) -> (i32, i32) {
    %c0_i32 = arith.constant 0 : i32
    %c0_i32_0 = arith.constant 0 : i32
    %c0_i32_1 = arith.constant 0 : i32
    return %c0_i32, %c0_i32_0 : i32, i32
  }
  func.func @transform_11(%arg0: i32) -> (i32, i32) {
    %c0_i32 = arith.constant 0 : i32
    %c0_i32_0 = arith.constant 0 : i32
    %c0_i32_1 = arith.constant 0 : i32
    return %c0_i32, %c0_i32_0 : i32, i32
  }
  func.func @transform_12(%arg0: i32) -> (i32, i32) {
    %c0_i32 = arith.constant 0 : i32
    %c0_i32_0 = arith.constant 0 : i32
    %c0_i32_1 = arith.constant 0 : i32
    return %c0_i32, %c0_i32_0 : i32, i32
  }
  func.func @transform_13(%arg0: i32) -> (i32, i32) {
    %c0_i32 = arith.constant 0 : i32
    %c0_i32_0 = arith.constant 0 : i32
    %c0_i32_1 = arith.constant 0 : i32
    return %c0_i32, %c0_i32_0 : i32, i32
  }
  func.func @transform_14(%arg0: i32) -> (i32, i32) {
    %c0_i32 = arith.constant 0 : i32
    %c0_i32_0 = arith.constant 0 : i32
    %c0_i32_1 = arith.constant 0 : i32
    return %c0_i32, %c0_i32_0 : i32, i32
  }
  func.func @transform_15(%arg0: i32) -> (i32, i32, i32) {
    %c0_i32 = arith.constant 0 : i32
    %c0_i32_0 = arith.constant 0 : i32
    %c0_i32_1 = arith.constant 0 : i32
    return %arg0, %c0_i32, %c0_i32_0 : i32, i32, i32
  }
}

module attributes {stable_mosaic.version = 11 : i64} {
  func.func @_offensive_attention_kernel(%arg0: i32, %arg1: memref<2x16x32xf32, #tpu.memory_space<vmem>>, %arg2: memref<2x16x32xf32, #tpu.memory_space<vmem>>, %arg3: memref<32x64xbf16, #tpu.memory_space<vmem>>, %arg4: memref<32x64xbf16, #tpu.memory_space<vmem>>, %arg5: memref<1x64xf32, #tpu.memory_space<vmem>>, %arg6: memref<64x32xbf16, #tpu.memory_space<vmem>>, %arg7: memref<1x32xf32, #tpu.memory_space<vmem>>, %arg8: memref<32x32xbf16, #tpu.memory_space<vmem>>, %arg9: memref<1x32xf32, #tpu.memory_space<vmem>>, %arg10: memref<32x16xbf16, #tpu.memory_space<vmem>>, %arg11: memref<1x16xf32, #tpu.memory_space<vmem>>, %arg12: memref<1x16xbf16, #tpu.memory_space<vmem>>, %arg13: memref<1x1xf32, #tpu.memory_space<vmem>>, %arg14: memref<32x4xf32, #tpu.memory_space<vmem>>, %arg15: memref<1x4xf32, #tpu.memory_space<vmem>>, %arg16: memref<2x1x8xf32, #tpu.memory_space<vmem>>) attributes {dimension_semantics = [#tpu.dimension_semantics<parallel>], iteration_bounds = array<i64: 1>, scalar_prefetch = 0 : i64, scratch_operands = 0 : i64, tpu.core_type = #tpu.core_type<tc>, window_params = [{transform_indices = @transform_0, window_bounds = array<i64: 2, 16, 32>}, {transform_indices = @transform_1, window_bounds = array<i64: 2, 16, 32>}, {pipeline_mode = #tpu.pipeline_mode<synchronous>, transform_indices = @transform_2, window_bounds = array<i64: 32, 64>}, {pipeline_mode = #tpu.pipeline_mode<synchronous>, transform_indices = @transform_3, window_bounds = array<i64: 32, 64>}, {pipeline_mode = #tpu.pipeline_mode<synchronous>, transform_indices = @transform_4, window_bounds = array<i64: 1, 64>}, {pipeline_mode = #tpu.pipeline_mode<synchronous>, transform_indices = @transform_5, window_bounds = array<i64: 64, 32>}, {pipeline_mode = #tpu.pipeline_mode<synchronous>, transform_indices = @transform_6, window_bounds = array<i64: 1, 32>}, {pipeline_mode = #tpu.pipeline_mode<synchronous>, transform_indices = @transform_7, window_bounds = array<i64: 32, 32>}, {pipeline_mode = #tpu.pipeline_mode<synchronous>, transform_indices = @transform_8, window_bounds = array<i64: 1, 32>}, {pipeline_mode = #tpu.pipeline_mode<synchronous>, transform_indices = @transform_9, window_bounds = array<i64: 32, 16>}, {pipeline_mode = #tpu.pipeline_mode<synchronous>, transform_indices = @transform_10, window_bounds = array<i64: 1, 16>}, {pipeline_mode = #tpu.pipeline_mode<synchronous>, transform_indices = @transform_11, window_bounds = array<i64: 1, 16>}, {pipeline_mode = #tpu.pipeline_mode<synchronous>, transform_indices = @transform_12, window_bounds = array<i64: 1, 1>}, {pipeline_mode = #tpu.pipeline_mode<synchronous>, transform_indices = @transform_13, window_bounds = array<i64: 32, 4>}, {pipeline_mode = #tpu.pipeline_mode<synchronous>, transform_indices = @transform_14, window_bounds = array<i64: 1, 4>}, {transform_indices = @transform_15, window_bounds = array<i64: 2, 1, 8>}]} {
    %c0 = arith.constant 0 : index
    %c0_0 = arith.constant 0 : index
    %c0_1 = arith.constant 0 : index
    %0 = vector.load %arg1[%c0, %c0_0, %c0_1] : memref<2x16x32xf32, #tpu.memory_space<vmem>>, vector<2x16x32xf32>
    %1 = vector.shape_cast %0 : vector<2x16x32xf32> to vector<32x32xf32>
    %2 = arith.truncf %1 : vector<32x32xf32> to vector<32x32xbf16>
    %c0_2 = arith.constant 0 : index
    %c0_3 = arith.constant 0 : index
    %c0_4 = arith.constant 0 : index
    %3 = vector.load %arg2[%c0_2, %c0_3, %c0_4] : memref<2x16x32xf32, #tpu.memory_space<vmem>>, vector<2x16x32xf32>
    %4 = vector.shape_cast %3 : vector<2x16x32xf32> to vector<32x32xf32>
    %5 = arith.truncf %4 : vector<32x32xf32> to vector<32x32xbf16>
    %c0_5 = arith.constant 0 : index
    %c0_6 = arith.constant 0 : index
    %6 = vector.load %arg3[%c0_5, %c0_6] : memref<32x64xbf16, #tpu.memory_space<vmem>>, vector<32x64xbf16>
    %cst = arith.constant dense<0.000000e+00> : vector<32x64xf32>
    %7 = tpu.matmul %2, %6, %cst {dimension_numbers = #tpu.dot_dimension_numbers<[1], [0], [0], [1], [0, 0, 1, 1], [], []>} : vector<32x32xbf16>, vector<32x64xbf16>, vector<32x64xf32> -> vector<32x64xf32>
    %c0_7 = arith.constant 0 : index
    %c0_8 = arith.constant 0 : index
    %8 = vector.load %arg4[%c0_7, %c0_8] : memref<32x64xbf16, #tpu.memory_space<vmem>>, vector<32x64xbf16>
    %cst_9 = arith.constant dense<0.000000e+00> : vector<32x64xf32>
    %9 = tpu.matmul %5, %8, %cst_9 {dimension_numbers = #tpu.dot_dimension_numbers<[1], [0], [0], [1], [0, 0, 1, 1], [], []>} : vector<32x32xbf16>, vector<32x64xbf16>, vector<32x64xf32> -> vector<32x64xf32>
    %10 = arith.addf %7, %9 : vector<32x64xf32>
    %c0_10 = arith.constant 0 : index
    %c0_11 = arith.constant 0 : index
    %11 = vector.load %arg5[%c0_10, %c0_11] : memref<1x64xf32, #tpu.memory_space<vmem>>, vector<1x64xf32>
    %12 = vector.broadcast %11 : vector<1x64xf32> to vector<32x64xf32>
    %13 = arith.addf %10, %12 : vector<32x64xf32>
    %cst_12 = arith.constant 0.000000e+00 : f32
    %14 = vector.broadcast %cst_12 : f32 to vector<32x64xf32>
    %15 = arith.maximumf %13, %14 : vector<32x64xf32>
    %16 = arith.truncf %15 : vector<32x64xf32> to vector<32x64xbf16>
    %c0_13 = arith.constant 0 : index
    %c0_14 = arith.constant 0 : index
    %17 = vector.load %arg6[%c0_13, %c0_14] : memref<64x32xbf16, #tpu.memory_space<vmem>>, vector<64x32xbf16>
    %cst_15 = arith.constant dense<0.000000e+00> : vector<32x32xf32>
    %18 = tpu.matmul %16, %17, %cst_15 {dimension_numbers = #tpu.dot_dimension_numbers<[1], [0], [0], [1], [0, 0, 1, 1], [], []>} : vector<32x64xbf16>, vector<64x32xbf16>, vector<32x32xf32> -> vector<32x32xf32>
    %c0_16 = arith.constant 0 : index
    %c0_17 = arith.constant 0 : index
    %19 = vector.load %arg7[%c0_16, %c0_17] : memref<1x32xf32, #tpu.memory_space<vmem>>, vector<1x32xf32>
    %20 = vector.broadcast %19 : vector<1x32xf32> to vector<32x32xf32>
    %21 = arith.addf %18, %20 : vector<32x32xf32>
    %cst_18 = arith.constant 0.000000e+00 : f32
    %22 = vector.broadcast %cst_18 : f32 to vector<32x32xf32>
    %23 = arith.maximumf %21, %22 : vector<32x32xf32>
    %24 = arith.truncf %23 : vector<32x32xf32> to vector<32x32xbf16>
    %c0_19 = arith.constant 0 : index
    %c0_20 = arith.constant 0 : index
    %25 = vector.load %arg8[%c0_19, %c0_20] : memref<32x32xbf16, #tpu.memory_space<vmem>>, vector<32x32xbf16>
    %cst_21 = arith.constant dense<0.000000e+00> : vector<32x32xf32>
    %26 = tpu.matmul %24, %25, %cst_21 {dimension_numbers = #tpu.dot_dimension_numbers<[1], [0], [0], [1], [0, 0, 1, 1], [], []>} : vector<32x32xbf16>, vector<32x32xbf16>, vector<32x32xf32> -> vector<32x32xf32>
    %c0_22 = arith.constant 0 : index
    %c0_23 = arith.constant 0 : index
    %27 = vector.load %arg9[%c0_22, %c0_23] : memref<1x32xf32, #tpu.memory_space<vmem>>, vector<1x32xf32>
    %28 = vector.broadcast %27 : vector<1x32xf32> to vector<32x32xf32>
    %29 = arith.addf %26, %28 : vector<32x32xf32>
    %cst_24 = arith.constant 0.000000e+00 : f32
    %30 = vector.broadcast %cst_24 : f32 to vector<32x32xf32>
    %31 = arith.maximumf %29, %30 : vector<32x32xf32>
    %32 = arith.truncf %31 : vector<32x32xf32> to vector<32x32xbf16>
    %c0_25 = arith.constant 0 : index
    %c0_26 = arith.constant 0 : index
    %33 = vector.load %arg10[%c0_25, %c0_26] : memref<32x16xbf16, #tpu.memory_space<vmem>>, vector<32x16xbf16>
    %cst_27 = arith.constant dense<0.000000e+00> : vector<32x16xf32>
    %34 = tpu.matmul %32, %33, %cst_27 {dimension_numbers = #tpu.dot_dimension_numbers<[1], [0], [0], [1], [0, 0, 1, 1], [], []>} : vector<32x32xbf16>, vector<32x16xbf16>, vector<32x16xf32> -> vector<32x16xf32>
    %c0_28 = arith.constant 0 : index
    %c0_29 = arith.constant 0 : index
    %35 = vector.load %arg11[%c0_28, %c0_29] : memref<1x16xf32, #tpu.memory_space<vmem>>, vector<1x16xf32>
    %36 = vector.broadcast %35 : vector<1x16xf32> to vector<32x16xf32>
    %37 = arith.addf %34, %36 : vector<32x16xf32>
    %cst_30 = arith.constant 0.000000e+00 : f32
    %38 = vector.broadcast %cst_30 : f32 to vector<32x16xf32>
    %39 = arith.maximumf %37, %38 : vector<32x16xf32>
    %40 = vector.shape_cast %39 : vector<32x16xf32> to vector<2x16x16xf32>
    %41 = arith.truncf %40 : vector<2x16x16xf32> to vector<2x16x16xbf16>
    %c0_31 = arith.constant 0 : index
    %c0_32 = arith.constant 0 : index
    %42 = vector.load %arg12[%c0_31, %c0_32] : memref<1x16xbf16, #tpu.memory_space<vmem>>, vector<1x16xbf16>
    %43 = vector.shape_cast %42 : vector<1x16xbf16> to vector<1x1x16xbf16>
    %44 = vector.broadcast %43 : vector<1x1x16xbf16> to vector<2x1x16xbf16>
    "tpu.trace_start"() <{level = 10 : i32, message = "bqf,bsf->bqs"}> : () -> ()
    %cst_33 = arith.constant dense<0.000000e+00> : vector<2x1x16xf32>
    %45 = tpu.matmul %44, %41, %cst_33 {dimension_numbers = #tpu.dot_dimension_numbers<[2], [2], [1], [1], [0, 0, 0, 1, 1, 1], [0], [0]>} : vector<2x1x16xbf16>, vector<2x16x16xbf16>, vector<2x1x16xf32> -> vector<2x1x16xf32>
    "tpu.trace_stop"() : () -> ()
    %c0_34 = arith.constant 0 : index
    %c0_35 = arith.constant 0 : index
    %46 = vector.load %arg13[%c0_34, %c0_35] : memref<1x1xf32, #tpu.memory_space<vmem>>, vector<1x1xf32>
    %47 = vector.shape_cast %46 : vector<1x1xf32> to vector<1x1x1xf32>
    %48 = vector.broadcast %47 : vector<1x1x1xf32> to vector<2x1x16xf32>
    %49 = arith.addf %45, %48 : vector<2x1x16xf32>
    %50 = tpu.iota {dimensions = array<i32: 2>} : vector<2x1x16xi32>
    %c0_i32 = arith.constant 0 : i32
    %51 = vector.broadcast %c0_i32 : i32 to vector<2x1x16xi32>
    %52 = arith.cmpi eq, %50, %51 : vector<2x1x16xi32>
    %c9_i32 = arith.constant 9 : i32
    %53 = vector.broadcast %c9_i32 : i32 to vector<2x1x16xi32>
    %54 = arith.cmpi sge, %50, %53 : vector<2x1x16xi32>
    %55 = arith.ori %52, %54 : vector<2x1x16xi1>
    %cst_36 = arith.constant -1.000000e+30 : f32
    %56 = vector.broadcast %cst_36 : f32 to vector<2x1x16xf32>
    %57 = arith.select %55, %56, %49 : vector<2x1x16xi1>, vector<2x1x16xf32>
    %cst_37 = arith.constant dense<0xFF800000> : vector<2x1xf32>
    %58 = vector.multi_reduction <maximumf>, %57, %cst_37 [2] : vector<2x1x16xf32> to vector<2x1xf32>
    %59 = vector.shape_cast %58 : vector<2x1xf32> to vector<2x1x1xf32>
    %60 = vector.broadcast %59 : vector<2x1x1xf32> to vector<2x1x16xf32>
    %61 = arith.subf %57, %60 : vector<2x1x16xf32>
    %62 = math.exp %61 : vector<2x1x16xf32>
    %cst_38 = arith.constant dense<0.000000e+00> : vector<2x1xf32>
    %63 = vector.multi_reduction <add>, %62, %cst_38 [2] : vector<2x1x16xf32> to vector<2x1xf32>
    %64 = vector.shape_cast %63 : vector<2x1xf32> to vector<2x1x1xf32>
    %65 = tpu.reciprocal %64 {approx = true} : vector<2x1x1xf32> -> vector<2x1x1xf32>
    %66 = vector.broadcast %65 : vector<2x1x1xf32> to vector<2x1x16xf32>
    %67 = arith.mulf %62, %66 : vector<2x1x16xf32>
    "tpu.trace_start"() <{level = 10 : i32, message = "bqs,bsh->bqh"}> : () -> ()
    %cst_39 = arith.constant dense<0.000000e+00> : vector<2x1x32xf32>
    %68 = tpu.matmul %67, %0, %cst_39 {dimension_numbers = #tpu.dot_dimension_numbers<[2], [1], [1], [2], [0, 0, 0, 1, 1, 2], [0], [0]>} : vector<2x1x16xf32>, vector<2x16x32xf32>, vector<2x1x32xf32> -> vector<2x1x32xf32>
    "tpu.trace_stop"() : () -> ()
    %c0_40 = arith.constant 0 : index
    %c0_41 = arith.constant 0 : index
    %69 = vector.load %arg14[%c0_40, %c0_41] : memref<32x4xf32, #tpu.memory_space<vmem>>, vector<32x4xf32>
    %70 = vector.shape_cast %69 : vector<32x4xf32> to vector<1x32x4xf32>
    %71 = vector.broadcast %70 : vector<1x32x4xf32> to vector<2x32x4xf32>
    "tpu.trace_start"() <{level = 10 : i32, message = "bqh,bhl->bql"}> : () -> ()
    %cst_42 = arith.constant dense<0.000000e+00> : vector<2x1x4xf32>
    %72 = tpu.matmul %68, %71, %cst_42 {dimension_numbers = #tpu.dot_dimension_numbers<[2], [1], [1], [2], [0, 0, 0, 1, 1, 2], [0], [0]>} : vector<2x1x32xf32>, vector<2x32x4xf32>, vector<2x1x4xf32> -> vector<2x1x4xf32>
    "tpu.trace_stop"() : () -> ()
    %c0_43 = arith.constant 0 : index
    %c0_44 = arith.constant 0 : index
    %73 = vector.load %arg15[%c0_43, %c0_44] : memref<1x4xf32, #tpu.memory_space<vmem>>, vector<1x4xf32>
    %74 = vector.shape_cast %73 : vector<1x4xf32> to vector<1x1x4xf32>
    %75 = vector.broadcast %74 : vector<1x1x4xf32> to vector<2x1x4xf32>
    %76 = arith.addf %72, %75 : vector<2x1x4xf32>
    %cst_45 = arith.constant dense<0xFF800000> : vector<2x1xf32>
    %77 = vector.multi_reduction <maximumf>, %76, %cst_45 [2] : vector<2x1x4xf32> to vector<2x1xf32>
    %78 = vector.shape_cast %77 : vector<2x1xf32> to vector<2x1x1xf32>
    %79 = vector.broadcast %78 : vector<2x1x1xf32> to vector<2x1x4xf32>
    %80 = arith.subf %76, %79 : vector<2x1x4xf32>
    %81 = math.exp %80 : vector<2x1x4xf32>
    %cst_46 = arith.constant dense<0.000000e+00> : vector<2x1xf32>
    %82 = vector.multi_reduction <add>, %81, %cst_46 [2] : vector<2x1x4xf32> to vector<2x1xf32>
    %83 = vector.shape_cast %82 : vector<2x1xf32> to vector<2x1x1xf32>
    %84 = vector.broadcast %83 : vector<2x1x1xf32> to vector<2x1x4xf32>
    %85 = arith.divf %81, %84 : vector<2x1x4xf32>
    %86 = tpu.concatenate %85, %76 in 2 : vector<2x1x4xf32>, vector<2x1x4xf32> -> vector<2x1x8xf32>
    %c0_47 = arith.constant 0 : index
    %c0_48 = arith.constant 0 : index
    %c0_49 = arith.constant 0 : index
    %87 = vector.load %arg16[%c0_47, %c0_48, %c0_49] : memref<2x1x8xf32, #tpu.memory_space<vmem>>, vector<2x1x8xf32>
    tpu.vector_store %arg16[%c0_47, %c0_48, %c0_49], %86 {strides = array<i32>} : memref<2x1x8xf32, #tpu.memory_space<vmem>>, vector<2x1x8xf32>,
    return
  }
  func.func @transform_0(%arg0: i32) -> (i32, i32, i32) {
    %c0_i32 = arith.constant 0 : i32
    %c0_i32_0 = arith.constant 0 : i32
    %c0_i32_1 = arith.constant 0 : i32
    return %arg0, %c0_i32, %c0_i32_0 : i32, i32, i32
  }
  func.func @transform_1(%arg0: i32) -> (i32, i32, i32) {
    %c0_i32 = arith.constant 0 : i32
    %c0_i32_0 = arith.constant 0 : i32
    %c0_i32_1 = arith.constant 0 : i32
    return %arg0, %c0_i32, %c0_i32_0 : i32, i32, i32
  }
  func.func @transform_2(%arg0: i32) -> (i32, i32) {
    %c0_i32 = arith.constant 0 : i32
    %c0_i32_0 = arith.constant 0 : i32
    %c0_i32_1 = arith.constant 0 : i32
    return %c0_i32, %c0_i32_0 : i32, i32
  }
  func.func @transform_3(%arg0: i32) -> (i32, i32) {
    %c0_i32 = arith.constant 0 : i32
    %c0_i32_0 = arith.constant 0 : i32
    %c0_i32_1 = arith.constant 0 : i32
    return %c0_i32, %c0_i32_0 : i32, i32
  }
  func.func @transform_4(%arg0: i32) -> (i32, i32) {
    %c0_i32 = arith.constant 0 : i32
    %c0_i32_0 = arith.constant 0 : i32
    %c0_i32_1 = arith.constant 0 : i32
    return %c0_i32, %c0_i32_0 : i32, i32
  }
  func.func @transform_5(%arg0: i32) -> (i32, i32) {
    %c0_i32 = arith.constant 0 : i32
    %c0_i32_0 = arith.constant 0 : i32
    %c0_i32_1 = arith.constant 0 : i32
    return %c0_i32, %c0_i32_0 : i32, i32
  }
  func.func @transform_6(%arg0: i32) -> (i32, i32) {
    %c0_i32 = arith.constant 0 : i32
    %c0_i32_0 = arith.constant 0 : i32
    %c0_i32_1 = arith.constant 0 : i32
    return %c0_i32, %c0_i32_0 : i32, i32
  }
  func.func @transform_7(%arg0: i32) -> (i32, i32) {
    %c0_i32 = arith.constant 0 : i32
    %c0_i32_0 = arith.constant 0 : i32
    %c0_i32_1 = arith.constant 0 : i32
    return %c0_i32, %c0_i32_0 : i32, i32
  }
  func.func @transform_8(%arg0: i32) -> (i32, i32) {
    %c0_i32 = arith.constant 0 : i32
    %c0_i32_0 = arith.constant 0 : i32
    %c0_i32_1 = arith.constant 0 : i32
    return %c0_i32, %c0_i32_0 : i32, i32
  }
  func.func @transform_9(%arg0: i32) -> (i32, i32) {
    %c0_i32 = arith.constant 0 : i32
    %c0_i32_0 = arith.constant 0 : i32
    %c0_i32_1 = arith.constant 0 : i32
    return %c0_i32, %c0_i32_0 : i32, i32
  }
  func.func @transform_10(%arg0: i32) -> (i32, i32) {
    %c0_i32 = arith.constant 0 : i32
    %c0_i32_0 = arith.constant 0 : i32
    %c0_i32_1 = arith.constant 0 : i32
    return %c0_i32, %c0_i32_0 : i32, i32
  }
  func.func @transform_11(%arg0: i32) -> (i32, i32) {
    %c0_i32 = arith.constant 0 : i32
    %c0_i32_0 = arith.constant 0 : i32
    %c0_i32_1 = arith.constant 0 : i32
    return %c0_i32, %c0_i32_0 : i32, i32
  }
  func.func @transform_12(%arg0: i32) -> (i32, i32) {
    %c0_i32 = arith.constant 0 : i32
    %c0_i32_0 = arith.constant 0 : i32
    %c0_i32_1 = arith.constant 0 : i32
    return %c0_i32, %c0_i32_0 : i32, i32
  }
  func.func @transform_13(%arg0: i32) -> (i32, i32) {
    %c0_i32 = arith.constant 0 : i32
    %c0_i32_0 = arith.constant 0 : i32
    %c0_i32_1 = arith.constant 0 : i32
    return %c0_i32, %c0_i32_0 : i32, i32
  }
  func.func @transform_14(%arg0: i32) -> (i32, i32) {
    %c0_i32 = arith.constant 0 : i32
    %c0_i32_0 = arith.constant 0 : i32
    %c0_i32_1 = arith.constant 0 : i32
    return %c0_i32, %c0_i32_0 : i32, i32
  }
  func.func @transform_15(%arg0: i32) -> (i32, i32, i32) {
    %c0_i32 = arith.constant 0 : i32
    %c0_i32_0 = arith.constant 0 : i32
    %c0_i32_1 = arith.constant 0 : i32
    return %arg0, %c0_i32, %c0_i32_0 : i32, i32, i32
  }
}

</mosaic_0001>

<llo_original>
// kernel: tpu_custom_call.1
$region0: #{tpu_custom_call.1}
  #allocation0 [shape = 'u32[]', space=smem, size = 0x4, offset = 0x4, fixed_abs, tag = 'smem constant byte address 0x4 - core index']
  #allocation1 [shape = 'u32[144,128]{1,0:T(1,128)}', space=vmem, size = 0x12000, scoped, tag = 'internal scratch']
  #allocation2 [shape = 'f32[1,1]{1,0:T(1,128)S(1)}', space=vmem, size = 0x200, scoped, tag = 'scoped memory for tpu_custom_call.1']
  %s0 = inlined_call_operand.vmem [shape: f32[2,16,32], index: 0, kind: input, shape index: {}]
  %s1 = inlined_call_operand.vmem [shape: f32[2,16,32], index: 1, kind: input, shape index: {}]
  %s2 = inlined_call_operand.vmem [shape: bf16[32,64], index: 2, kind: input, shape index: {}]
  %s3 = inlined_call_operand.vmem [shape: bf16[32,64], index: 3, kind: input, shape index: {}]
  %s4 = inlined_call_operand.vmem [shape: f32[1,64], index: 4, kind: input, shape index: {}]
  %s5 = inlined_call_operand.vmem [shape: bf16[64,32], index: 5, kind: input, shape index: {}]
  %s6 = inlined_call_operand.vmem [shape: f32[1,32], index: 6, kind: input, shape index: {}]
  %s7 = inlined_call_operand.vmem [shape: bf16[32,32], index: 7, kind: input, shape index: {}]
  %s8 = inlined_call_operand.hbm [shape: f32[1,32], index: 8, kind: input, shape index: {}]
  %s9 = inlined_call_operand.vmem [shape: bf16[32,16], index: 9, kind: input, shape index: {}]
  %s10 = inlined_call_operand.vmem [shape: f32[1,16], index: 10, kind: input, shape index: {}]
  %s11 = inlined_call_operand.vmem [shape: bf16[1,16], index: 11, kind: input, shape index: {}]
  %s12 = inlined_call_operand.<no memory space> [shape: f32[1,1], index: 12, kind: input, shape index: {}]
  %s13 = inlined_call_operand.vmem [shape: f32[32,4], index: 13, kind: input, shape index: {}]
  %s14 = inlined_call_operand.vmem [shape: f32[1,4], index: 14, kind: input, shape index: {}]
  %s15 = inlined_call_operand.hbm [shape: f32[2,1,8], index: 15, kind: output, shape index: {}]
  %s16 = sld [smem:[#allocation0]]
  $region74: #{tpu_custom_call.1} parent=0
    _
  %s18 = ssub.s32 1, %s16
  %s19 = scalar_select 0, %s18, %s16
  %v20 = vstv %s12
  %21 = vst [vmem:[#allocation2] sm:$0x1] %v20
  $region1: #{tpu_custom_call.1} parent=0
    #allocation3 [shape = 'u8[512]{0}', space=vmem, size = 0x400, scoped, tag = 'input window, operand 8, single buffered']
    #allocation4 [shape = 's32[1]{0}', space=sflag, size = 0x4, scoped, tag = 'scoped memory for tpu_custom_call.1']
    #allocation5 [shape = 's32[1]{0}', space=sflag, size = 0x4, scoped, tag = 'scoped memory for tpu_custom_call.1']
    #allocation6 [shape = 'u8[1024]{0}', space=vmem, size = 0x400, scoped, tag = 'output window, operand 0, single buffered']
    %22 = vsyncpa [#allocation4], 0
    %23 = vsyncpa [#allocation5], 0
    // Predicated region
    $region2: #{tpu_custom_call.1} parent=1 // pred_check
      _
    $region3: #{tpu_custom_call.1} parent=1 // pred_check_branch
      %25 = sbr.rel (0) target = $region5
    $region4: #{tpu_custom_call.1} parent=1 // pred_region
      _
    $region5: #{tpu_custom_call.1} parent=1 // pred_fallthru
      _
    // Predicated region
    $region6: #{tpu_custom_call.1} parent=1 // pred_check
      _
    $region7: #{tpu_custom_call.1} parent=1 // pred_check_branch
      %27 = sbr.rel (0) target = $region9
    $region8: #{tpu_custom_call.1} parent=1 // pred_region
      _
    $region9: #{tpu_custom_call.1} parent=1 // pred_fallthru
      _
    // Predicated region
    $region10: #{tpu_custom_call.1} parent=1 // pred_check
      _
    $region11: #{tpu_custom_call.1} parent=1 // pred_check_branch
      %29 = sbr.rel (0) target = $region13
    $region12: #{tpu_custom_call.1} parent=1 // pred_region
      _
    $region13: #{tpu_custom_call.1} parent=1 // pred_fallthru
      _
    // Predicated region
    $region14: #{tpu_custom_call.1} parent=1 // pred_check
      _
    $region15: #{tpu_custom_call.1} parent=1 // pred_check_branch
      %31 = sbr.rel (0) target = $region17
    $region16: #{tpu_custom_call.1} parent=1 // pred_region
      _
    $region17: #{tpu_custom_call.1} parent=1 // pred_fallthru
      _
    // Predicated region
    $region18: #{tpu_custom_call.1} parent=1 // pred_check
      _
    $region19: #{tpu_custom_call.1} parent=1 // pred_check_branch
      %33 = sbr.rel (0) target = $region21
    $region20: #{tpu_custom_call.1} parent=1 // pred_region
      _
    $region21: #{tpu_custom_call.1} parent=1 // pred_fallthru
      _
    // Predicated region
    $region22: #{tpu_custom_call.1} parent=1 // pred_check
      _
    $region23: #{tpu_custom_call.1} parent=1 // pred_check_branch
      %35 = sbr.rel (0) target = $region25
    $region24: #{tpu_custom_call.1} parent=1 // pred_region
      _
    $region25: #{tpu_custom_call.1} parent=1 // pred_fallthru
      _
    // Predicated region
    $region26: #{tpu_custom_call.1} parent=1 // pred_check
      _
    $region27: #{tpu_custom_call.1} parent=1 // pred_check_branch
      %37 = sbr.rel (0) target = $region29
    $region28: #{tpu_custom_call.1} parent=1 // pred_region
      _
    $region29: #{tpu_custom_call.1} parent=1 // pred_fallthru
      _
    // Predicated region
    $region30: #{tpu_custom_call.1} parent=1 // pred_check
      _
    $region31: #{tpu_custom_call.1} parent=1 // pred_check_branch
      %39 = sbr.rel (0) target = $region33
    $region32: #{tpu_custom_call.1} parent=1 // pred_region
      _
    $region33: #{tpu_custom_call.1} parent=1 // pred_fallthru
      _
    // Predicated region
    $region34: #{tpu_custom_call.1} parent=1 // pred_check
      _
    $region35: #{tpu_custom_call.1} parent=1 // pred_check_branch
      %41 = sbr.rel (0) target = $region37
    $region36: #{tpu_custom_call.1} parent=1 // pred_region
      %s43 = ssub.s32 16, 16
      %44 = vsyncadd [#allocation4], %s43
      %s46 = sshll.u32 [#allocation3], 4
      %s47 = int_to_ptr.vmem [resolvable:$true] %s46
      %49 = dma.hbm_to_vmem [thread:$0]  %s8, 16, %s47, [#allocation4]
    $region37: #{tpu_custom_call.1} parent=1 // pred_fallthru
      _
    // Predicated region
    $region38: #{tpu_custom_call.1} parent=1 // pred_check
      _
    $region39: #{tpu_custom_call.1} parent=1 // pred_check_branch
      %51 = sbr.rel (0) target = $region41
    $region40: #{tpu_custom_call.1} parent=1 // pred_region
      _
    $region41: #{tpu_custom_call.1} parent=1 // pred_fallthru
      _
    // Predicated region
    $region42: #{tpu_custom_call.1} parent=1 // pred_check
      _
    $region43: #{tpu_custom_call.1} parent=1 // pred_check_branch
      %53 = sbr.rel (0) target = $region45
    $region44: #{tpu_custom_call.1} parent=1 // pred_region
      _
    $region45: #{tpu_custom_call.1} parent=1 // pred_fallthru
      _
    // Predicated region
    $region46: #{tpu_custom_call.1} parent=1 // pred_check
      _
    $region47: #{tpu_custom_call.1} parent=1 // pred_check_branch
      %55 = sbr.rel (0) target = $region49
    $region48: #{tpu_custom_call.1} parent=1 // pred_region
      _
    $region49: #{tpu_custom_call.1} parent=1 // pred_fallthru
      _
    // Predicated region
    $region50: #{tpu_custom_call.1} parent=1 // pred_check
      _
    $region51: #{tpu_custom_call.1} parent=1 // pred_check_branch
      %57 = sbr.rel (0) target = $region53
    $region52: #{tpu_custom_call.1} parent=1 // pred_region
      _
    $region53: #{tpu_custom_call.1} parent=1 // pred_fallthru
      _
    // Predicated region
    $region54: #{tpu_custom_call.1} parent=1 // pred_check
      _
    $region55: #{tpu_custom_call.1} parent=1 // pred_check_branch
      %59 = sbr.rel (0) target = $region57
    $region56: #{tpu_custom_call.1} parent=1 // pred_region
      _
    $region57: #{tpu_custom_call.1} parent=1 // pred_fallthru
      _
    // Predicated region
    $region58: #{tpu_custom_call.1} parent=1 // pred_check
      _
    $region59: #{tpu_custom_call.1} parent=1 // pred_check_branch
      %61 = sbr.rel (0) target = $region61
    $region60: #{tpu_custom_call.1} parent=1 // pred_region
      _
    $region61: #{tpu_custom_call.1} parent=1 // pred_fallthru
      _
    // Predicated region
    $region62: #{tpu_custom_call.1} parent=1 // pred_check
      _
    $region63: #{tpu_custom_call.1} parent=1 // pred_check_branch
      %63 = sbr.rel (0) target = $region65
    $region64: #{tpu_custom_call.1} parent=1 // pred_region
      %64 = dma.done [#allocation4], 16
    $region65: #{tpu_custom_call.1} parent=1 // pred_fallthru
      _
    %v66 = vld [vmem:[%s0] sm:$0xff]
    %v67 = vld [vmem:[%s0 + $0x8] sm:$0xff]
    %v68 = vld [vmem:[%s0 + $0x10] sm:$0xff]
    %v69 = vld [vmem:[%s0 + $0x18] sm:$0xff]
    %v70 = vpack.c.bf16 %v67, %v66
    %v71 = vpack.c.bf16 %v69, %v68
    %v72 = vld [vmem:[%s1] sm:$0xff]
    %v73 = vld [vmem:[%s1 + $0x8] sm:$0xff]
    %v74 = vld [vmem:[%s1 + $0x10] sm:$0xff]
    %v75 = vld [vmem:[%s1 + $0x18] sm:$0xff]
    %v76 = vpack.c.bf16 %v73, %v72
    %v77 = vpack.c.bf16 %v75, %v74
    %v78 = vld [vmem:[%s2] sm:$0xf]
    %v79 = vld [vmem:[%s2 + $0x4] sm:$0xf]
    %v80 = vld [vmem:[%s2 + $0x8] sm:$0xf]
    %v81 = vld [vmem:[%s2 + $0xc] sm:$0xf]
    %v82 = vld [vmem:[%s3] sm:$0xf]
    %v83 = vld [vmem:[%s3 + $0x4] sm:$0xf]
    %v84 = vld [vmem:[%s3 + $0x8] sm:$0xf]
    %v85 = vld [vmem:[%s3 + $0xc] sm:$0xf]
    %v90 = vunpack.c.l.b16 %v82
    %v91 = vunpack.c.l.b16 %v83
    %v92 = vunpack.c.l.b16 %v84
    %v93 = vunpack.c.l.b16 %v85
    %v94 = vpack.c.b16 %v91, %v90
    %v95 = vpack.c.b16 %v93, %v92
    %vm98 = vcmask 261120
    %v100 = vsel %vm98, %v76, 0
    %v103 = vsel %vm98, %v77, 0
    %105 = vmatprep.subr.bf16.mxu0 0
    %106 = vmatpush1.bf16.msra.mxu0 %v94
    %107 = vmatprep.subr.bf16.mxu0 0
    %108 = vmatpush1.bf16.msra.mxu0 %v95
    %109 = vmatprep.subr.bf16.mxu0 0
    %110 = vmatpush1.bf16.msra.mxu0 0
    %111 = vmatprep.subr.bf16.mxu0 0
    %112 = vmatpush1.bf16.msra.mxu0 0
    %113 = vmatprep.subr.bf16.mxu0 0
    %114 = vmatpush1.bf16.msra.mxu0 0
    %115 = vmatprep.subr.bf16.mxu0 0
    %116 = vmatpush1.bf16.msra.mxu0 0
    %117 = vmatprep.subr.bf16.mxu0 0
    %118 = vmatpush1.bf16.msra.mxu0 0
    %119 = vmatprep.subr.bf16.mxu0 0
    %120 = vmatpush1.bf16.msra.mxu0 0
    %121 = vmatprep.subr.bf16.mxu0 0
    %122 = vmatpush1.bf16.msra.mxu0 0
    %123 = vmatprep.subr.bf16.mxu0 0
    %124 = vmatpush1.bf16.msra.mxu0 0
    %125 = vmatprep.subr.bf16.mxu0 0
    %126 = vmatpush1.bf16.msra.mxu0 0
    %127 = vmatprep.subr.bf16.mxu0 0
    %128 = vmatpush1.bf16.msra.mxu0 0
    %129 = vmatprep.subr.bf16.mxu0 0
    %130 = vmatpush1.bf16.msra.mxu0 0
    %131 = vmatprep.subr.bf16.mxu0 0
    %132 = vmatpush1.bf16.msra.mxu0 0
    %133 = vmatprep.subr.bf16.mxu0 0
    %134 = vmatpush1.bf16.msra.mxu0 0
    %135 = vmatprep.subr.bf16.mxu0 0
    %136 = vmatpush1.bf16.msra.mxu0 0
    %137 = vmatprep.mubr.bf16.mxu0 0
    %138 = vmatmul.mubr.bf16.gmra.mrb[0].mxu0 %v100
    %v139 = vpop.f32.mrb[0].mxu0
    %v140 = vadd.f32 0.0, %v139
    %v141 = vpop.f32.mrb[0].mxu0
    %v142 = vpop.f32.mrb[0].mxu0
    %v143 = vadd.f32 0.0, %v142
    %v144 = vpop.f32.mrb[0].mxu0
    %145 = vmatprep.mubr.bf16.mxu0 0
    %146 = vmatmul.mubr.bf16.gmra.mrb[0].mxu0 %v103
    %v147 = vpop.f32.mrb[0].mxu0
    %v148 = vadd.f32 0.0, %v147
    %v149 = vpop.f32.mrb[0].mxu0
    %v150 = vpop.f32.mrb[0].mxu0
    %v151 = vadd.f32 0.0, %v150
    %v152 = vpop.f32.mrb[0].mxu0
    %153 = vdwg.mxu0
    %v158 = vunpack.c.l.b16 %v78
    %v159 = vunpack.c.l.b16 %v79
    %v160 = vunpack.c.l.b16 %v80
    %v161 = vunpack.c.l.b16 %v81
    %v162 = vpack.c.b16 %v159, %v158
    %v163 = vpack.c.b16 %v161, %v160
    %v167 = vsel %vm98, %v70, 0
    %v170 = vsel %vm98, %v71, 0
    %172 = vmatprep.subr.bf16.mxu0 0
    %173 = vmatpush1.bf16.msra.mxu0 %v162
    %174 = vmatprep.subr.bf16.mxu0 0
    %175 = vmatpush1.bf16.msra.mxu0 %v163
    %176 = vmatprep.subr.bf16.mxu0 0
    %177 = vmatpush1.bf16.msra.mxu0 0
    %178 = vmatprep.subr.bf16.mxu0 0
    %179 = vmatpush1.bf16.msra.mxu0 0
    %180 = vmatprep.subr.bf16.mxu0 0
    %181 = vmatpush1.bf16.msra.mxu0 0
    %182 = vmatprep.subr.bf16.mxu0 0
    %183 = vmatpush1.bf16.msra.mxu0 0
    %184 = vmatprep.subr.bf16.mxu0 0
    %185 = vmatpush1.bf16.msra.mxu0 0
    %186 = vmatprep.subr.bf16.mxu0 0
    %187 = vmatpush1.bf16.msra.mxu0 0
    %188 = vmatprep.subr.bf16.mxu0 0
    %189 = vmatpush1.bf16.msra.mxu0 0
    %190 = vmatprep.subr.bf16.mxu0 0
    %191 = vmatpush1.bf16.msra.mxu0 0
    %192 = vmatprep.subr.bf16.mxu0 0
    %193 = vmatpush1.bf16.msra.mxu0 0
    %194 = vmatprep.subr.bf16.mxu0 0
    %195 = vmatpush1.bf16.msra.mxu0 0
    %196 = vmatprep.subr.bf16.mxu0 0
    %197 = vmatpush1.bf16.msra.mxu0 0
    %198 = vmatprep.subr.bf16.mxu0 0
    %199 = vmatpush1.bf16.msra.mxu0 0
    %200 = vmatprep.subr.bf16.mxu0 0
    %201 = vmatpush1.bf16.msra.mxu0 0
    %202 = vmatprep.subr.bf16.mxu0 0
    %203 = vmatpush1.bf16.msra.mxu0 0
    %204 = vmatprep.mubr.bf16.mxu0 0
    %205 = vmatmul.mubr.bf16.gmra.mrb[0].mxu0 %v167
    %v206 = vpop.f32.mrb[0].mxu0
    %v207 = vadd.f32 %v140, %v206
    %v208 = vpop.f32.mrb[0].mxu0
    %v209 = vpop.f32.mrb[0].mxu0
    %v210 = vadd.f32 %v143, %v209
    %v211 = vpop.f32.mrb[0].mxu0
    %212 = vmatprep.mubr.bf16.mxu0 0
    %213 = vmatmul.mubr.bf16.gmra.mrb[0].mxu0 %v170
    %v214 = vpop.f32.mrb[0].mxu0
    %v215 = vadd.f32 %v148, %v214
    %v216 = vpop.f32.mrb[0].mxu0
    %v217 = vpop.f32.mrb[0].mxu0
    %v218 = vadd.f32 %v151, %v217
    %v219 = vpop.f32.mrb[0].mxu0
    %220 = vdwg.mxu0
    %v221 = vld [vmem:[%s4] sm:$0x1]
    %v223 = vlaneseq
    %v224 = vshrl.u32 %v223, 7
    %v225 = vsub.s32 0, %v224
    %v226 = vrot.slane %v221, %v225
    %v228 = vadd.f32 %v207, %v226
    %v229 = vadd.f32 %v210, %v226
    %v230 = vadd.f32 %v215, %v226
    %v231 = vadd.f32 %v218, %v226
    %v232 = vmax.f32 %v228, 0.0
    %v233 = vmax.f32 %v229, 0.0
    %v234 = vmax.f32 %v230, 0.0
    %v235 = vmax.f32 %v231, 0.0
    %v236 = vpack.c.bf16 %v233, %v232
    %v237 = vpack.c.bf16 %v235, %v234
    %v238 = vld [vmem:[%s5] sm:$0xf]
    %v239 = vld [vmem:[%s5 + $0x4] sm:$0xf]
    %v240 = vld [vmem:[%s5 + $0x8] sm:$0xf]
    %v241 = vld [vmem:[%s5 + $0xc] sm:$0xf]
    %v242 = vld [vmem:[%s5 + $0x10] sm:$0xf]
    %v243 = vld [vmem:[%s5 + $0x14] sm:$0xf]
    %v244 = vld [vmem:[%s5 + $0x18] sm:$0xf]
    %v245 = vld [vmem:[%s5 + $0x1c] sm:$0xf]
    %v246 = vld [vmem:[%s6] sm:$0x1]
    %v248 = vlaneseq
    %v249 = vshrl.u32 %v248, 7
    %v250 = vsub.s32 0, %v249
    %v251 = vrot.slane %v246, %v250
    %v261 = vunpack.c.l.b16 %v238
    %v262 = vunpack.c.l.b16 %v239
    %v263 = vunpack.c.l.b16 %v240
    %v264 = vunpack.c.l.b16 %v241
    %v265 = vunpack.c.l.b16 %v242
    %v266 = vunpack.c.l.b16 %v243
    %v267 = vunpack.c.l.b16 %v244
    %v268 = vunpack.c.l.b16 %v245
    %v269 = vpack.c.b16 %v262, %v261
    %v270 = vpack.c.b16 %v264, %v263
    %v271 = vpack.c.b16 %v266, %v265
    %v272 = vpack.c.b16 %v268, %v267
    %vm277 = vcmask 523264
    %v279 = vsel %vm277, %v236, 0
    %v282 = vsel %vm277, %v237, 0
    %284 = vmatprep.subr.bf16.mxu0 0
    %285 = vmatpush1.bf16.msra.mxu0 %v269
    %286 = vmatprep.subr.bf16.mxu0 0
    %287 = vmatpush1.bf16.msra.mxu0 %v270
    %288 = vmatprep.subr.bf16.mxu0 0
    %289 = vmatpush1.bf16.msra.mxu0 %v271
    %290 = vmatprep.subr.bf16.mxu0 0
    %291 = vmatpush1.bf16.msra.mxu0 %v272
    %292 = vmatprep.subr.bf16.mxu0 0
    %293 = vmatpush1.bf16.msra.mxu0 0
    %294 = vmatprep.subr.bf16.mxu0 0
    %295 = vmatpush1.bf16.msra.mxu0 0
    %296 = vmatprep.subr.bf16.mxu0 0
    %297 = vmatpush1.bf16.msra.mxu0 0
    %298 = vmatprep.subr.bf16.mxu0 0
    %299 = vmatpush1.bf16.msra.mxu0 0
    %300 = vmatprep.subr.bf16.mxu0 0
    %301 = vmatpush1.bf16.msra.mxu0 0
    %302 = vmatprep.subr.bf16.mxu0 0
    %303 = vmatpush1.bf16.msra.mxu0 0
    %304 = vmatprep.subr.bf16.mxu0 0
    %305 = vmatpush1.bf16.msra.mxu0 0
    %306 = vmatprep.subr.bf16.mxu0 0
    %307 = vmatpush1.bf16.msra.mxu0 0
    %308 = vmatprep.subr.bf16.mxu0 0
    %309 = vmatpush1.bf16.msra.mxu0 0
    %310 = vmatprep.subr.bf16.mxu0 0
    %311 = vmatpush1.bf16.msra.mxu0 0
    %312 = vmatprep.subr.bf16.mxu0 0
    %313 = vmatpush1.bf16.msra.mxu0 0
    %314 = vmatprep.subr.bf16.mxu0 0
    %315 = vmatpush1.bf16.msra.mxu0 0
    %316 = vmatprep.mubr.bf16.mxu0 0
    %317 = vmatmul.mubr.bf16.gmra.mrb[0].mxu0 %v279
    %v318 = vpop.f32.mrb[0].mxu0
    %v319 = vadd.f32 %v251, %v318
    %v320 = vpop.f32.mrb[0].mxu0
    %v321 = vpop.f32.mrb[0].mxu0
    %v322 = vadd.f32 %v251, %v321
    %v323 = vpop.f32.mrb[0].mxu0
    %324 = vmatprep.mubr.bf16.mxu0 0
    %325 = vmatmul.mubr.bf16.gmra.mrb[0].mxu0 %v282
    %v326 = vpop.f32.mrb[0].mxu0
    %v327 = vadd.f32 %v251, %v326
    %v328 = vpop.f32.mrb[0].mxu0
    %v329 = vpop.f32.mrb[0].mxu0
    %v330 = vadd.f32 %v251, %v329
    %v331 = vpop.f32.mrb[0].mxu0
    %332 = vdwg.mxu0
    %v333 = vmax.f32 %v319, 0.0
    %v334 = vmax.f32 %v322, 0.0
    %v335 = vmax.f32 %v327, 0.0
    %v336 = vmax.f32 %v330, 0.0
    %v337 = vpack.c.bf16 %v334, %v333
    %v338 = vpack.c.bf16 %v336, %v335
    %v339 = vld [vmem:[%s7] sm:$0xf]
    %v340 = vld [vmem:[%s7 + $0x4] sm:$0xf]
    %v341 = vld [vmem:[%s7 + $0x8] sm:$0xf]
    %v342 = vld [vmem:[%s7 + $0xc] sm:$0xf]
    %v343 = vld [vmem:[#allocation3] sm:$0x1]
    %v345 = vlaneseq
    %v346 = vshrl.u32 %v345, 7
    %v347 = vsub.s32 0, %v346
    %v348 = vrot.slane %v343, %v347
    %v354 = vunpack.c.l.b16 %v339
    %v355 = vunpack.c.l.b16 %v340
    %v356 = vunpack.c.l.b16 %v341
    %v357 = vunpack.c.l.b16 %v342
    %v358 = vpack.c.b16 %v355, %v354
    %v359 = vpack.c.b16 %v357, %v356
    %v363 = vsel %vm98, %v337, 0
    %v366 = vsel %vm98, %v338, 0
    %368 = vmatprep.subr.bf16.mxu0 0
    %369 = vmatpush1.bf16.msra.mxu0 %v358
    %370 = vmatprep.subr.bf16.mxu0 0
    %371 = vmatpush1.bf16.msra.mxu0 %v359
    %372 = vmatprep.subr.bf16.mxu0 0
    %373 = vmatpush1.bf16.msra.mxu0 0
    %374 = vmatprep.subr.bf16.mxu0 0
    %375 = vmatpush1.bf16.msra.mxu0 0
    %376 = vmatprep.subr.bf16.mxu0 0
    %377 = vmatpush1.bf16.msra.mxu0 0
    %378 = vmatprep.subr.bf16.mxu0 0
    %379 = vmatpush1.bf16.msra.mxu0 0
    %380 = vmatprep.subr.bf16.mxu0 0
    %381 = vmatpush1.bf16.msra.mxu0 0
    %382 = vmatprep.subr.bf16.mxu0 0
    %383 = vmatpush1.bf16.msra.mxu0 0
    %384 = vmatprep.subr.bf16.mxu0 0
    %385 = vmatpush1.bf16.msra.mxu0 0
    %386 = vmatprep.subr.bf16.mxu0 0
    %387 = vmatpush1.bf16.msra.mxu0 0
    %388 = vmatprep.subr.bf16.mxu0 0
    %389 = vmatpush1.bf16.msra.mxu0 0
    %390 = vmatprep.subr.bf16.mxu0 0
    %391 = vmatpush1.bf16.msra.mxu0 0
    %392 = vmatprep.subr.bf16.mxu0 0
    %393 = vmatpush1.bf16.msra.mxu0 0
    %394 = vmatprep.subr.bf16.mxu0 0
    %395 = vmatpush1.bf16.msra.mxu0 0
    %396 = vmatprep.subr.bf16.mxu0 0
    %397 = vmatpush1.bf16.msra.mxu0 0
    %398 = vmatprep.subr.bf16.mxu0 0
    %399 = vmatpush1.bf16.msra.mxu0 0
    %400 = vmatprep.mubr.bf16.mxu0 0
    %401 = vmatmul.mubr.bf16.gmra.mrb[0].mxu0 %v363
    %v402 = vpop.f32.mrb[0].mxu0
    %v403 = vadd.f32 %v348, %v402
    %v404 = vpop.f32.mrb[0].mxu0
    %v405 = vpop.f32.mrb[0].mxu0
    %v406 = vadd.f32 %v348, %v405
    %v407 = vpop.f32.mrb[0].mxu0
    %408 = vmatprep.mubr.bf16.mxu0 0
    %409 = vmatmul.mubr.bf16.gmra.mrb[0].mxu0 %v366
    %v410 = vpop.f32.mrb[0].mxu0
    %v411 = vadd.f32 %v348, %v410
    %v412 = vpop.f32.mrb[0].mxu0
    %v413 = vpop.f32.mrb[0].mxu0
    %v414 = vadd.f32 %v348, %v413
    %v415 = vpop.f32.mrb[0].mxu0
    %416 = vdwg.mxu0
    %v417 = vmax.f32 %v403, 0.0
    %v418 = vmax.f32 %v406, 0.0
    %v419 = vmax.f32 %v411, 0.0
    %v420 = vmax.f32 %v414, 0.0
    %v421 = vpack.c.bf16 %v418, %v417
    %v422 = vpack.c.bf16 %v420, %v419
    %v423 = vld [vmem:[%s9] sm:$0xf]
    %v424 = vld [vmem:[%s9 + $0x4] sm:$0xf]
    %v425 = vld [vmem:[%s9 + $0x8] sm:$0xf]
    %v426 = vld [vmem:[%s9 + $0xc] sm:$0xf]
    %v427 = vld [vmem:[%s10] sm:$0x1]
    %v429 = vlaneseq
    %v430 = vshrl.u32 %v429, 7
    %v431 = vsub.s32 0, %v430
    %v432 = vrot.slane %v427, %v431
    %v438 = vunpack.c.l.b16 %v423
    %v439 = vunpack.c.l.b16 %v424
    %v440 = vunpack.c.l.b16 %v425
    %v441 = vunpack.c.l.b16 %v426
    %v442 = vpack.c.b16 %v439, %v438
    %v443 = vpack.c.b16 %v441, %v440
    %v447 = vsel %vm98, %v421, 0
    %v450 = vsel %vm98, %v422, 0
    %452 = vmatprep.subr.bf16.mxu0 0
    %453 = vmatpush1.bf16.msra.mxu0 %v442
    %454 = vmatprep.subr.bf16.mxu0 0
    %455 = vmatpush1.bf16.msra.mxu0 %v443
    %456 = vmatprep.subr.bf16.mxu0 0
    %457 = vmatpush1.bf16.msra.mxu0 0
    %458 = vmatprep.subr.bf16.mxu0 0
    %459 = vmatpush1.bf16.msra.mxu0 0
    %460 = vmatprep.subr.bf16.mxu0 0
    %461 = vmatpush1.bf16.msra.mxu0 0
    %462 = vmatprep.subr.bf16.mxu0 0
    %463 = vmatpush1.bf16.msra.mxu0 0
    %464 = vmatprep.subr.bf16.mxu0 0
    %465 = vmatpush1.bf16.msra.mxu0 0
    %466 = vmatprep.subr.bf16.mxu0 0
    %467 = vmatpush1.bf16.msra.mxu0 0
    %468 = vmatprep.subr.bf16.mxu0 0
    %469 = vmatpush1.bf16.msra.mxu0 0
    %470 = vmatprep.subr.bf16.mxu0 0
    %471 = vmatpush1.bf16.msra.mxu0 0
    %472 = vmatprep.subr.bf16.mxu0 0
    %473 = vmatpush1.bf16.msra.mxu0 0
    %474 = vmatprep.subr.bf16.mxu0 0
    %475 = vmatpush1.bf16.msra.mxu0 0
    %476 = vmatprep.subr.bf16.mxu0 0
    %477 = vmatpush1.bf16.msra.mxu0 0
    %478 = vmatprep.subr.bf16.mxu0 0
    %479 = vmatpush1.bf16.msra.mxu0 0
    %480 = vmatprep.subr.bf16.mxu0 0
    %481 = vmatpush1.bf16.msra.mxu0 0
    %482 = vmatprep.subr.bf16.mxu0 0
    %483 = vmatpush1.bf16.msra.mxu0 0
    %484 = vmatprep.mubr.bf16.mxu0 0
    %485 = vmatmul.mubr.bf16.gmra.mrb[0].mxu0 %v447
    %v486 = vpop.f32.mrb[0].mxu0
    %v487 = vadd.f32 %v432, %v486
    %v488 = vpop.f32.mrb[0].mxu0
    %v489 = vpop.f32.mrb[0].mxu0
    %v490 = vadd.f32 %v432, %v489
    %v491 = vpop.f32.mrb[0].mxu0
    %492 = vmatprep.mubr.bf16.mxu0 0
    %493 = vmatmul.mubr.bf16.gmra.mrb[0].mxu0 %v450
    %v494 = vpop.f32.mrb[0].mxu0
    %v495 = vadd.f32 %v432, %v494
    %v496 = vpop.f32.mrb[0].mxu0
    %v497 = vpop.f32.mrb[0].mxu0
    %v498 = vadd.f32 %v432, %v497
    %v499 = vpop.f32.mrb[0].mxu0
    %500 = vdwg.mxu0
    %v501 = vmax.f32 %v487, 0.0
    %v502 = vmax.f32 %v490, 0.0
    %v503 = vmax.f32 %v495, 0.0
    %v504 = vmax.f32 %v498, 0.0
    %v505 = vpack.c.bf16 %v502, %v501
    %v506 = vpack.c.bf16 %v504, %v503
    %v507 = vld [vmem:[%s11] sm:$0x1]
    %v508 = vld [vmem:[#allocation2] sm:$0x1]
    %510 = vset.pattern.permute.xlu0 0
    %511 = vperm.xlu0 %510, %v508
    %v512 = vpop.permute.xlu0 %511
    %v514 = vlaneseq
    %v515 = vshrl.u32 %v514, 7
    %v516 = vsub.s32 0, %v515
    %v517 = vrot.slane %v512, %v516
    %vm518 = vcmask 130048
    %v520 = vsel %vm518, %v507, 0
    %v523 = vsel %vm518, %v505, 0
    %525 = vmatprep.subr.bf16.mxu0 0
    %526 = vmatpush1.bf16.xpose.msra.mxu0 %v523
    %527 = vmatprep.subr.bf16.mxu0 0
    %528 = vmatpush1.bf16.xpose.msra.mxu0 0
    %529 = vmatprep.subr.bf16.mxu0 0
    %530 = vmatpush1.bf16.xpose.msra.mxu0 0
    %531 = vmatprep.subr.bf16.mxu0 0
    %532 = vmatpush1.bf16.xpose.msra.mxu0 0
    %533 = vmatprep.subr.bf16.mxu0 0
    %534 = vmatpush1.bf16.xpose.msra.mxu0 0
    %535 = vmatprep.subr.bf16.mxu0 0
    %536 = vmatpush1.bf16.xpose.msra.mxu0 0
    %537 = vmatprep.subr.bf16.mxu0 0
    %538 = vmatpush1.bf16.xpose.msra.mxu0 0
    %539 = vmatprep.subr.bf16.mxu0 0
    %540 = vmatpush1.bf16.xpose.msra.mxu0 0
    %541 = vmatprep.subr.bf16.mxu0 0
    %542 = vmatpush1.bf16.xpose.msra.mxu0 0
    %543 = vmatprep.subr.bf16.mxu0 0
    %544 = vmatpush1.bf16.xpose.msra.mxu0 0
    %545 = vmatprep.subr.bf16.mxu0 0
    %546 = vmatpush1.bf16.xpose.msra.mxu0 0
    %547 = vmatprep.subr.bf16.mxu0 0
    %548 = vmatpush1.bf16.xpose.msra.mxu0 0
    %549 = vmatprep.subr.bf16.mxu0 0
    %550 = vmatpush1.bf16.xpose.msra.mxu0 0
    %551 = vmatprep.subr.bf16.mxu0 0
    %552 = vmatpush1.bf16.xpose.msra.mxu0 0
    %553 = vmatprep.subr.bf16.mxu0 0
    %554 = vmatpush1.bf16.xpose.msra.mxu0 0
    %555 = vmatprep.subr.bf16.mxu0 0
    %556 = vmatpush1.bf16.xpose.msra.mxu0 0
    %557 = vmatprep.mubr.bf16.mxu0 0
    %558 = vmatmul.mubr.bf16.gmra.mrb[0].mxu0 %v520
    %v559 = vpop.f32.mrb[0].mxu0
    %v560 = vadd.f32 %v517, %v559
    %v561 = vpop.f32.mrb[0].mxu0
    %v562 = vpop.f32.mrb[0].mxu0
    %v563 = vpop.f32.mrb[0].mxu0
    %564 = vdwg.mxu0
    %v566 = vsel %vm518, %v506, 0
    %568 = vmatprep.subr.bf16.mxu0 0
    %569 = vmatpush1.bf16.xpose.msra.mxu0 %v566
    %570 = vmatprep.subr.bf16.mxu0 0
    %571 = vmatpush1.bf16.xpose.msra.mxu0 0
    %572 = vmatprep.subr.bf16.mxu0 0
    %573 = vmatpush1.bf16.xpose.msra.mxu0 0
    %574 = vmatprep.subr.bf16.mxu0 0
    %575 = vmatpush1.bf16.xpose.msra.mxu0 0
    %576 = vmatprep.subr.bf16.mxu0 0
    %577 = vmatpush1.bf16.xpose.msra.mxu0 0
    %578 = vmatprep.subr.bf16.mxu0 0
    %579 = vmatpush1.bf16.xpose.msra.mxu0 0
    %580 = vmatprep.subr.bf16.mxu0 0
    %581 = vmatpush1.bf16.xpose.msra.mxu0 0
    %582 = vmatprep.subr.bf16.mxu0 0
    %583 = vmatpush1.bf16.xpose.msra.mxu0 0
    %584 = vmatprep.subr.bf16.mxu0 0
    %585 = vmatpush1.bf16.xpose.msra.mxu0 0
    %586 = vmatprep.subr.bf16.mxu0 0
    %587 = vmatpush1.bf16.xpose.msra.mxu0 0
    %588 = vmatprep.subr.bf16.mxu0 0
    %589 = vmatpush1.bf16.xpose.msra.mxu0 0
    %590 = vmatprep.subr.bf16.mxu0 0
    %591 = vmatpush1.bf16.xpose.msra.mxu0 0
    %592 = vmatprep.subr.bf16.mxu0 0
    %593 = vmatpush1.bf16.xpose.msra.mxu0 0
    %594 = vmatprep.subr.bf16.mxu0 0
    %595 = vmatpush1.bf16.xpose.msra.mxu0 0
    %596 = vmatprep.subr.bf16.mxu0 0
    %597 = vmatpush1.bf16.xpose.msra.mxu0 0
    %598 = vmatprep.subr.bf16.mxu0 0
    %599 = vmatpush1.bf16.xpose.msra.mxu0 0
    %600 = vmatprep.mubr.bf16.mxu0 0
    %601 = vmatmul.mubr.bf16.gmra.mrb[0].mxu0 %v520
    %v602 = vpop.f32.mrb[0].mxu0
    %v603 = vadd.f32 %v517, %v602
    %v604 = vpop.f32.mrb[0].mxu0
    %v605 = vpop.f32.mrb[0].mxu0
    %v606 = vpop.f32.mrb[0].mxu0
    %607 = vdwg.mxu0
    %v608 = vlaneseq
    %v609 = vand.u32 %v608, 127
    %vm610 = vcmp.eq.s32.totalorder %v609, 0
    %vm611 = vcmp.ge.s32.totalorder %v609, 9
    %vm612 = vmor %vm610, %vm611
    %v613 = vsel %vm612, -1e+30, %v560
    %v614 = vsel %vm612, -1e+30, %v603
    %vm615 = vcmask 122880
    %v616 = vsel %vm615, %v613, -inf
    %617 = vmax.xlane.f32.xlu0 %v616
    %v618 = vpop.xlane.xlu0 %617
    %v619 = vsel %vm615, %v614, -inf
    %620 = vmax.xlane.f32.xlu0 %v619
    %v621 = vpop.xlane.xlu0 %620
    %v622 = vsub.f32 %v613, %v618
    %v623 = vsub.f32 %v614, %v621
    %v624 = vmul.f32 %v622, 1.442695
    %v625 = vpow.pop %v624
    %v626 = vmul.f32 %v623, 1.442695
    %v627 = vpow.pop %v626
    %v628 = vsel %vm615, %v625, 0.0
    %629 = vadd.xlane.f32.xlu0 %v628
    %v630 = vpop.xlane.xlu0 %629
    %v631 = vsel %vm615, %v627, 0.0
    %632 = vadd.xlane.f32.xlu0 %v631
    %v633 = vpop.xlane.xlu0 %632
    %v634 = vrcp.pop %v630
    %v635 = vrcp.pop %v633
    %v636 = vmul.f32 %v625, %v634
    %v637 = vmul.f32 %v627, %v635
    %v639 = vsel %vm518, %v636, 0
    %641 = vmatprep.subr.mxu0 0.0
    %642 = vmatpush1.msra.mxu0 %v66
    %643 = vmatprep.subr.mxu0 0.0
    %644 = vmatpush1.msra.mxu0 %v67
    %645 = vmatprep.subr.mxu0 0.0
    %646 = vmatpush1.msra.mxu0 0.0
    %647 = vmatprep.subr.mxu0 0.0
    %648 = vmatpush1.msra.mxu0 0.0
    %649 = vmatprep.subr.mxu0 0.0
    %650 = vmatpush1.msra.mxu0 0.0
    %651 = vmatprep.subr.mxu0 0.0
    %652 = vmatpush1.msra.mxu0 0.0
    %653 = vmatprep.subr.mxu0 0.0
    %654 = vmatpush1.msra.mxu0 0.0
    %655 = vmatprep.subr.mxu0 0.0
    %656 = vmatpush1.msra.mxu0 0.0
    %657 = vmatprep.subr.mxu0 0.0
    %658 = vmatpush1.msra.mxu0 0.0
    %659 = vmatprep.subr.mxu0 0.0
    %660 = vmatpush1.msra.mxu0 0.0
    %661 = vmatprep.subr.mxu0 0.0
    %662 = vmatpush1.msra.mxu0 0.0
    %663 = vmatprep.subr.mxu0 0.0
    %664 = vmatpush1.msra.mxu0 0.0
    %665 = vmatprep.subr.mxu0 0.0
    %666 = vmatpush1.msra.mxu0 0.0
    %667 = vmatprep.subr.mxu0 0.0
    %668 = vmatpush1.msra.mxu0 0.0
    %669 = vmatprep.subr.mxu0 0.0
    %670 = vmatpush1.msra.mxu0 0.0
    %671 = vmatprep.subr.mxu0 0.0
    %672 = vmatpush1.msra.mxu0 0.0
    %673 = vmatprep.subr.mxu0 0.0
    %674 = vmatpush1.msra.mxu0 0.0
    %675 = vmatprep.subr.mxu0 0.0
    %676 = vmatpush1.msra.mxu0 0.0
    %677 = vmatprep.subr.mxu0 0.0
    %678 = vmatpush1.msra.mxu0 0.0
    %679 = vmatprep.subr.mxu0 0.0
    %680 = vmatpush1.msra.mxu0 0.0
    %681 = vmatprep.subr.mxu0 0.0
    %682 = vmatpush1.msra.mxu0 0.0
    %683 = vmatprep.subr.mxu0 0.0
    %684 = vmatpush1.msra.mxu0 0.0
    %685 = vmatprep.subr.mxu0 0.0
    %686 = vmatpush1.msra.mxu0 0.0
    %687 = vmatprep.subr.mxu0 0.0
    %688 = vmatpush1.msra.mxu0 0.0
    %689 = vmatprep.subr.mxu0 0.0
    %690 = vmatpush1.msra.mxu0 0.0
    %691 = vmatprep.subr.mxu0 0.0
    %692 = vmatpush1.msra.mxu0 0.0
    %693 = vmatprep.subr.mxu0 0.0
    %694 = vmatpush1.msra.mxu0 0.0
    %695 = vmatprep.subr.mxu0 0.0
    %696 = vmatpush1.msra.mxu0 0.0
    %697 = vmatprep.subr.mxu0 0.0
    %698 = vmatpush1.msra.mxu0 0.0
    %699 = vmatprep.subr.mxu0 0.0
    %700 = vmatpush1.msra.mxu0 0.0
    %701 = vmatprep.subr.mxu0 0.0
    %702 = vmatpush1.msra.mxu0 0.0
    %703 = vmatprep.subr.mxu0 0.0
    %704 = vmatpush1.msra.mxu0 0.0
    %705 = vmatprep.mubr.f32.mxu0 0.0
    %706 = vmatmul.mubr.f32.gmra.mrb[0].mxu0 %v639
    %v707 = vpop.f32.mrb[0].mxu0
    %v708 = vadd.f32 0.0, %v707
    %v709 = vpop.f32.mrb[0].mxu0
    %710 = vdwg.mxu0
    %v712 = vsel %vm518, %v637, 0
    %714 = vmatprep.subr.mxu0 0.0
    %715 = vmatpush1.msra.mxu0 %v68
    %716 = vmatprep.subr.mxu0 0.0
    %717 = vmatpush1.msra.mxu0 %v69
    %718 = vmatprep.subr.mxu0 0.0
    %719 = vmatpush1.msra.mxu0 0.0
    %720 = vmatprep.subr.mxu0 0.0
    %721 = vmatpush1.msra.mxu0 0.0
    %722 = vmatprep.subr.mxu0 0.0
    %723 = vmatpush1.msra.mxu0 0.0
    %724 = vmatprep.subr.mxu0 0.0
    %725 = vmatpush1.msra.mxu0 0.0
    %726 = vmatprep.subr.mxu0 0.0
    %727 = vmatpush1.msra.mxu0 0.0
    %728 = vmatprep.subr.mxu0 0.0
    %729 = vmatpush1.msra.mxu0 0.0
    %730 = vmatprep.subr.mxu0 0.0
    %731 = vmatpush1.msra.mxu0 0.0
    %732 = vmatprep.subr.mxu0 0.0
    %733 = vmatpush1.msra.mxu0 0.0
    %734 = vmatprep.subr.mxu0 0.0
    %735 = vmatpush1.msra.mxu0 0.0
    %736 = vmatprep.subr.mxu0 0.0
    %737 = vmatpush1.msra.mxu0 0.0
    %738 = vmatprep.subr.mxu0 0.0
    %739 = vmatpush1.msra.mxu0 0.0
    %740 = vmatprep.subr.mxu0 0.0
    %741 = vmatpush1.msra.mxu0 0.0
    %742 = vmatprep.subr.mxu0 0.0
    %743 = vmatpush1.msra.mxu0 0.0
    %744 = vmatprep.subr.mxu0 0.0
    %745 = vmatpush1.msra.mxu0 0.0
    %746 = vmatprep.subr.mxu0 0.0
    %747 = vmatpush1.msra.mxu0 0.0
    %748 = vmatprep.subr.mxu0 0.0
    %749 = vmatpush1.msra.mxu0 0.0
    %750 = vmatprep.subr.mxu0 0.0
    %751 = vmatpush1.msra.mxu0 0.0
    %752 = vmatprep.subr.mxu0 0.0
    %753 = vmatpush1.msra.mxu0 0.0
    %754 = vmatprep.subr.mxu0 0.0
    %755 = vmatpush1.msra.mxu0 0.0
    %756 = vmatprep.subr.mxu0 0.0
    %757 = vmatpush1.msra.mxu0 0.0
    %758 = vmatprep.subr.mxu0 0.0
    %759 = vmatpush1.msra.mxu0 0.0
    %760 = vmatprep.subr.mxu0 0.0
    %761 = vmatpush1.msra.mxu0 0.0
    %762 = vmatprep.subr.mxu0 0.0
    %763 = vmatpush1.msra.mxu0 0.0
    %764 = vmatprep.subr.mxu0 0.0
    %765 = vmatpush1.msra.mxu0 0.0
    %766 = vmatprep.subr.mxu0 0.0
    %767 = vmatpush1.msra.mxu0 0.0
    %768 = vmatprep.subr.mxu0 0.0
    %769 = vmatpush1.msra.mxu0 0.0
    %770 = vmatprep.subr.mxu0 0.0
    %771 = vmatpush1.msra.mxu0 0.0
    %772 = vmatprep.subr.mxu0 0.0
    %773 = vmatpush1.msra.mxu0 0.0
    %774 = vmatprep.subr.mxu0 0.0
    %775 = vmatpush1.msra.mxu0 0.0
    %776 = vmatprep.subr.mxu0 0.0
    %777 = vmatpush1.msra.mxu0 0.0
    %778 = vmatprep.mubr.f32.mxu0 0.0
    %779 = vmatmul.mubr.f32.gmra.mrb[0].mxu0 %v712
    %v780 = vpop.f32.mrb[0].mxu0
    %v781 = vadd.f32 0.0, %v780
    %v782 = vpop.f32.mrb[0].mxu0
    %783 = vdwg.mxu0
    %v784 = vld [vmem:[%s13] sm:$0xff]
    %v785 = vld [vmem:[%s13 + $0x8] sm:$0xff]
    %v786 = vld [vmem:[%s13 + $0x10] sm:$0xff]
    %v787 = vld [vmem:[%s13 + $0x18] sm:$0xff]
    %v788 = vld [vmem:[%s14] sm:$0x1]
    %v790 = vsel %vm98, %v708, 0
    %792 = vmatprep.subr.mxu0 0.0
    %793 = vmatpush1.msra.mxu0 %v784
    %794 = vmatprep.subr.mxu0 0.0
    %795 = vmatpush1.msra.mxu0 %v785
    %796 = vmatprep.subr.mxu0 0.0
    %797 = vmatpush1.msra.mxu0 %v786
    %798 = vmatprep.subr.mxu0 0.0
    %799 = vmatpush1.msra.mxu0 %v787
    %800 = vmatprep.subr.mxu0 0.0
    %801 = vmatpush1.msra.mxu0 0.0
    %802 = vmatprep.subr.mxu0 0.0
    %803 = vmatpush1.msra.mxu0 0.0
    %804 = vmatprep.subr.mxu0 0.0
    %805 = vmatpush1.msra.mxu0 0.0
    %806 = vmatprep.subr.mxu0 0.0
    %807 = vmatpush1.msra.mxu0 0.0
    %808 = vmatprep.subr.mxu0 0.0
    %809 = vmatpush1.msra.mxu0 0.0
    %810 = vmatprep.subr.mxu0 0.0
    %811 = vmatpush1.msra.mxu0 0.0
    %812 = vmatprep.subr.mxu0 0.0
    %813 = vmatpush1.msra.mxu0 0.0
    %814 = vmatprep.subr.mxu0 0.0
    %815 = vmatpush1.msra.mxu0 0.0
    %816 = vmatprep.subr.mxu0 0.0
    %817 = vmatpush1.msra.mxu0 0.0
    %818 = vmatprep.subr.mxu0 0.0
    %819 = vmatpush1.msra.mxu0 0.0
    %820 = vmatprep.subr.mxu0 0.0
    %821 = vmatpush1.msra.mxu0 0.0
    %822 = vmatprep.subr.mxu0 0.0
    %823 = vmatpush1.msra.mxu0 0.0
    %824 = vmatprep.subr.mxu0 0.0
    %825 = vmatpush1.msra.mxu0 0.0
    %826 = vmatprep.subr.mxu0 0.0
    %827 = vmatpush1.msra.mxu0 0.0
    %828 = vmatprep.subr.mxu0 0.0
    %829 = vmatpush1.msra.mxu0 0.0
    %830 = vmatprep.subr.mxu0 0.0
    %831 = vmatpush1.msra.mxu0 0.0
    %832 = vmatprep.subr.mxu0 0.0
    %833 = vmatpush1.msra.mxu0 0.0
    %834 = vmatprep.subr.mxu0 0.0
    %835 = vmatpush1.msra.mxu0 0.0
    %836 = vmatprep.subr.mxu0 0.0
    %837 = vmatpush1.msra.mxu0 0.0
    %838 = vmatprep.subr.mxu0 0.0
    %839 = vmatpush1.msra.mxu0 0.0
    %840 = vmatprep.subr.mxu0 0.0
    %841 = vmatpush1.msra.mxu0 0.0
    %842 = vmatprep.subr.mxu0 0.0
    %843 = vmatpush1.msra.mxu0 0.0
    %844 = vmatprep.subr.mxu0 0.0
    %845 = vmatpush1.msra.mxu0 0.0
    %846 = vmatprep.subr.mxu0 0.0
    %847 = vmatpush1.msra.mxu0 0.0
    %848 = vmatprep.subr.mxu0 0.0
    %849 = vmatpush1.msra.mxu0 0.0
    %850 = vmatprep.subr.mxu0 0.0
    %851 = vmatpush1.msra.mxu0 0.0
    %852 = vmatprep.subr.mxu0 0.0
    %853 = vmatpush1.msra.mxu0 0.0
    %854 = vmatprep.subr.mxu0 0.0
    %855 = vmatpush1.msra.mxu0 0.0
    %856 = vmatprep.mubr.f32.mxu0 0.0
    %857 = vmatmul.mubr.f32.gmra.mrb[0].mxu0 %v790
    %v858 = vpop.f32.mrb[0].mxu0
    %v859 = vadd.f32 %v788, %v858
    %v860 = vpop.f32.mrb[0].mxu0
    %861 = vdwg.mxu0
    %v863 = vsel %vm98, %v781, 0
    %865 = vmatprep.subr.mxu0 0.0
    %866 = vmatpush1.msra.mxu0 %v784
    %867 = vmatprep.subr.mxu0 0.0
    %868 = vmatpush1.msra.mxu0 %v785
    %869 = vmatprep.subr.mxu0 0.0
    %870 = vmatpush1.msra.mxu0 %v786
    %871 = vmatprep.subr.mxu0 0.0
    %872 = vmatpush1.msra.mxu0 %v787
    %873 = vmatprep.subr.mxu0 0.0
    %874 = vmatpush1.msra.mxu0 0.0
    %875 = vmatprep.subr.mxu0 0.0
    %876 = vmatpush1.msra.mxu0 0.0
    %877 = vmatprep.subr.mxu0 0.0
    %878 = vmatpush1.msra.mxu0 0.0
    %879 = vmatprep.subr.mxu0 0.0
    %880 = vmatpush1.msra.mxu0 0.0
    %881 = vmatprep.subr.mxu0 0.0
    %882 = vmatpush1.msra.mxu0 0.0
    %883 = vmatprep.subr.mxu0 0.0
    %884 = vmatpush1.msra.mxu0 0.0
    %885 = vmatprep.subr.mxu0 0.0
    %886 = vmatpush1.msra.mxu0 0.0
    %887 = vmatprep.subr.mxu0 0.0
    %888 = vmatpush1.msra.mxu0 0.0
    %889 = vmatprep.subr.mxu0 0.0
    %890 = vmatpush1.msra.mxu0 0.0
    %891 = vmatprep.subr.mxu0 0.0
    %892 = vmatpush1.msra.mxu0 0.0
    %893 = vmatprep.subr.mxu0 0.0
    %894 = vmatpush1.msra.mxu0 0.0
    %895 = vmatprep.subr.mxu0 0.0
    %896 = vmatpush1.msra.mxu0 0.0
    %897 = vmatprep.subr.mxu0 0.0
    %898 = vmatpush1.msra.mxu0 0.0
    %899 = vmatprep.subr.mxu0 0.0
    %900 = vmatpush1.msra.mxu0 0.0
    %901 = vmatprep.subr.mxu0 0.0
    %902 = vmatpush1.msra.mxu0 0.0
    %903 = vmatprep.subr.mxu0 0.0
    %904 = vmatpush1.msra.mxu0 0.0
    %905 = vmatprep.subr.mxu0 0.0
    %906 = vmatpush1.msra.mxu0 0.0
    %907 = vmatprep.subr.mxu0 0.0
    %908 = vmatpush1.msra.mxu0 0.0
    %909 = vmatprep.subr.mxu0 0.0
    %910 = vmatpush1.msra.mxu0 0.0
    %911 = vmatprep.subr.mxu0 0.0
    %912 = vmatpush1.msra.mxu0 0.0
    %913 = vmatprep.subr.mxu0 0.0
    %914 = vmatpush1.msra.mxu0 0.0
    %915 = vmatprep.subr.mxu0 0.0
    %916 = vmatpush1.msra.mxu0 0.0
    %917 = vmatprep.subr.mxu0 0.0
    %918 = vmatpush1.msra.mxu0 0.0
    %919 = vmatprep.subr.mxu0 0.0
    %920 = vmatpush1.msra.mxu0 0.0
    %921 = vmatprep.subr.mxu0 0.0
    %922 = vmatpush1.msra.mxu0 0.0
    %923 = vmatprep.subr.mxu0 0.0
    %924 = vmatpush1.msra.mxu0 0.0
    %925 = vmatprep.subr.mxu0 0.0
    %926 = vmatpush1.msra.mxu0 0.0
    %927 = vmatprep.subr.mxu0 0.0
    %928 = vmatpush1.msra.mxu0 0.0
    %929 = vmatprep.mubr.f32.mxu0 0.0
    %930 = vmatmul.mubr.f32.gmra.mrb[0].mxu0 %v863
    %v931 = vpop.f32.mrb[0].mxu0
    %v932 = vadd.f32 %v788, %v931
    %v933 = vpop.f32.mrb[0].mxu0
    %934 = vdwg.mxu0
    %vm935 = vcmask 24576
    %v936 = vsel %vm935, %v859, -inf
    %937 = vmax.xlane.f32.xlu0 %v936
    %v938 = vpop.xlane.xlu0 %937
    %v939 = vsel %vm935, %v932, -inf
    %940 = vmax.xlane.f32.xlu0 %v939
    %v941 = vpop.xlane.xlu0 %940
    %v942 = vsub.f32 %v859, %v938
    %v943 = vsub.f32 %v932, %v941
    %v944 = vmul.f32 %v942, 1.442695
    %v945 = vpow.pop %v944
    %v946 = vmul.f32 %v943, 1.442695
    %v947 = vpow.pop %v946
    %v948 = vsel %vm935, %v945, 0.0
    %949 = vadd.xlane.f32.xlu0 %v948
    %v950 = vpop.xlane.xlu0 %949
    %v951 = vsel %vm935, %v947, 0.0
    %952 = vadd.xlane.f32.xlu0 %v951
    %v953 = vpop.xlane.xlu0 %952
    %v954 = vrcp.pop %v950
    %v955 = vmul.f32 %v945, %v954
    %v956 = vrcp.pop %v953
    %v957 = vmul.f32 %v947, %v956
    %960 = vrot.lane.b32.xlu0 %v859, 4
    %v961 = vpop.permute.xlu0 %960
    %962 = vrot.lane.b32.xlu0 %v932, 4
    %v963 = vpop.permute.xlu0 %962
    %vm966 = vcmask 31744
    %v967 = vsel %vm966, %v955, %v961
    %v968 = vsel %vm966, %v957, %v963
    %vm969 = vcmask 57344
    %970 = vst.msk [vmem:[#allocation6] sm:$0x1] %vm969, %v967
    %971 = vst.msk [vmem:[#allocation6 + $0x1] sm:$0x1] %vm969, %v968
    // Predicated region
    $region66: #{tpu_custom_call.1} parent=1 // pred_check
      _
    $region67: #{tpu_custom_call.1} parent=1 // pred_check_branch
      %973 = sbr.rel (0) target = $region69
    $region68: #{tpu_custom_call.1} parent=1 // pred_region
      %s975 = ssub.s32 32, 32
      %976 = vsyncadd [#allocation5], %s975
      %s977 = sshll.u32 [#allocation6], 4
      %s978 = int_to_ptr.vmem [resolvable:$true] %s977
      %983 = dma.vmem_to_hbm [thread:$0]  %s978, 32, %s15, [#allocation5], 16, 16, 1
    $region69: #{tpu_custom_call.1} parent=1 // pred_fallthru
      _
    // Predicated region
    $region70: #{tpu_custom_call.1} parent=1 // pred_check
      _
    $region71: #{tpu_custom_call.1} parent=1 // pred_check_branch
      %985 = sbr.rel (0) target = $region73
    $region72: #{tpu_custom_call.1} parent=1 // pred_region
      %986 = dma.done [#allocation5], 32
    $region73: #{tpu_custom_call.1} parent=1 // pred_fallthru
      _
    %987 = vsyncpa [#allocation4], 1
    %988 = vsyncpa [#allocation5], 1

// kernel: tpu_custom_call.1
$region0: #{tpu_custom_call.1}
  #allocation0 [shape = 'u32[]', space=smem, size = 0x4, offset = 0x4, fixed_abs, tag = 'smem constant byte address 0x4 - core index']
  #allocation1 [shape = 'u32[144,128]{1,0:T(1,128)}', space=vmem, size = 0x12000, scoped, tag = 'internal scratch']
  #allocation2 [shape = 'f32[1,1]{1,0:T(1,128)S(1)}', space=vmem, size = 0x200, scoped, tag = 'scoped memory for tpu_custom_call.1']
  %s0 = inlined_call_operand.vmem [shape: f32[2,16,32], index: 0, kind: input, shape index: {}]
  %s1 = inlined_call_operand.vmem [shape: f32[2,16,32], index: 1, kind: input, shape index: {}]
  %s2 = inlined_call_operand.vmem [shape: bf16[32,64], index: 2, kind: input, shape index: {}]
  %s3 = inlined_call_operand.vmem [shape: bf16[32,64], index: 3, kind: input, shape index: {}]
  %s4 = inlined_call_operand.vmem [shape: f32[1,64], index: 4, kind: input, shape index: {}]
  %s5 = inlined_call_operand.vmem [shape: bf16[64,32], index: 5, kind: input, shape index: {}]
  %s6 = inlined_call_operand.vmem [shape: f32[1,32], index: 6, kind: input, shape index: {}]
  %s7 = inlined_call_operand.vmem [shape: bf16[32,32], index: 7, kind: input, shape index: {}]
  %s8 = inlined_call_operand.hbm [shape: f32[1,32], index: 8, kind: input, shape index: {}]
  %s9 = inlined_call_operand.vmem [shape: bf16[32,16], index: 9, kind: input, shape index: {}]
  %s10 = inlined_call_operand.vmem [shape: f32[1,16], index: 10, kind: input, shape index: {}]
  %s11 = inlined_call_operand.vmem [shape: bf16[1,16], index: 11, kind: input, shape index: {}]
  %s12 = inlined_call_operand.<no memory space> [shape: f32[1,1], index: 12, kind: input, shape index: {}]
  %s13 = inlined_call_operand.vmem [shape: f32[32,4], index: 13, kind: input, shape index: {}]
  %s14 = inlined_call_operand.vmem [shape: f32[1,4], index: 14, kind: input, shape index: {}]
  %s15 = inlined_call_operand.hbm [shape: f32[2,1,8], index: 15, kind: output, shape index: {}]
  %s16 = sld [smem:[#allocation0]]
  $region74: #{tpu_custom_call.1} parent=0
    _
  %s18 = ssub.s32 1, %s16
  %s19 = scalar_select 0, %s18, %s16
  %v20 = vstv %s12
  %21 = vst [vmem:[#allocation2] sm:$0x1] %v20
  $region1: #{tpu_custom_call.1} parent=0
    #allocation3 [shape = 'u8[512]{0}', space=vmem, size = 0x400, scoped, tag = 'input window, operand 8, single buffered']
    #allocation4 [shape = 's32[1]{0}', space=sflag, size = 0x4, scoped, tag = 'scoped memory for tpu_custom_call.1']
    #allocation5 [shape = 's32[1]{0}', space=sflag, size = 0x4, scoped, tag = 'scoped memory for tpu_custom_call.1']
    #allocation6 [shape = 'u8[1024]{0}', space=vmem, size = 0x400, scoped, tag = 'output window, operand 0, single buffered']
    %22 = vsyncpa [#allocation4], 0
    %23 = vsyncpa [#allocation5], 0
    // Predicated region
    $region2: #{tpu_custom_call.1} parent=1 // pred_check
      _
    $region3: #{tpu_custom_call.1} parent=1 // pred_check_branch
      %25 = sbr.rel (0) target = $region5
    $region4: #{tpu_custom_call.1} parent=1 // pred_region
      _
    $region5: #{tpu_custom_call.1} parent=1 // pred_fallthru
      _
    // Predicated region
    $region6: #{tpu_custom_call.1} parent=1 // pred_check
      _
    $region7: #{tpu_custom_call.1} parent=1 // pred_check_branch
      %27 = sbr.rel (0) target = $region9
    $region8: #{tpu_custom_call.1} parent=1 // pred_region
      _
    $region9: #{tpu_custom_call.1} parent=1 // pred_fallthru
      _
    // Predicated region
    $region10: #{tpu_custom_call.1} parent=1 // pred_check
      _
    $region11: #{tpu_custom_call.1} parent=1 // pred_check_branch
      %29 = sbr.rel (0) target = $region13
    $region12: #{tpu_custom_call.1} parent=1 // pred_region
      _
    $region13: #{tpu_custom_call.1} parent=1 // pred_fallthru
      _
    // Predicated region
    $region14: #{tpu_custom_call.1} parent=1 // pred_check
      _
    $region15: #{tpu_custom_call.1} parent=1 // pred_check_branch
      %31 = sbr.rel (0) target = $region17
    $region16: #{tpu_custom_call.1} parent=1 // pred_region
      _
    $region17: #{tpu_custom_call.1} parent=1 // pred_fallthru
      _
    // Predicated region
    $region18: #{tpu_custom_call.1} parent=1 // pred_check
      _
    $region19: #{tpu_custom_call.1} parent=1 // pred_check_branch
      %33 = sbr.rel (0) target = $region21
    $region20: #{tpu_custom_call.1} parent=1 // pred_region
      _
    $region21: #{tpu_custom_call.1} parent=1 // pred_fallthru
      _
    // Predicated region
    $region22: #{tpu_custom_call.1} parent=1 // pred_check
      _
    $region23: #{tpu_custom_call.1} parent=1 // pred_check_branch
      %35 = sbr.rel (0) target = $region25
    $region24: #{tpu_custom_call.1} parent=1 // pred_region
      _
    $region25: #{tpu_custom_call.1} parent=1 // pred_fallthru
      _
    // Predicated region
    $region26: #{tpu_custom_call.1} parent=1 // pred_check
      _
    $region27: #{tpu_custom_call.1} parent=1 // pred_check_branch
      %37 = sbr.rel (0) target = $region29
    $region28: #{tpu_custom_call.1} parent=1 // pred_region
      _
    $region29: #{tpu_custom_call.1} parent=1 // pred_fallthru
      _
    // Predicated region
    $region30: #{tpu_custom_call.1} parent=1 // pred_check
      _
    $region31: #{tpu_custom_call.1} parent=1 // pred_check_branch
      %39 = sbr.rel (0) target = $region33
    $region32: #{tpu_custom_call.1} parent=1 // pred_region
      _
    $region33: #{tpu_custom_call.1} parent=1 // pred_fallthru
      _
    // Predicated region
    $region34: #{tpu_custom_call.1} parent=1 // pred_check
      _
    $region35: #{tpu_custom_call.1} parent=1 // pred_check_branch
      %41 = sbr.rel (0) target = $region37
    $region36: #{tpu_custom_call.1} parent=1 // pred_region
      %s43 = ssub.s32 16, 16
      %44 = vsyncadd [#allocation4], %s43
      %s46 = sshll.u32 [#allocation3], 4
      %s47 = int_to_ptr.vmem [resolvable:$true] %s46
      %49 = dma.hbm_to_vmem [thread:$0]  %s8, 16, %s47, [#allocation4]
    $region37: #{tpu_custom_call.1} parent=1 // pred_fallthru
      _
    // Predicated region
    $region38: #{tpu_custom_call.1} parent=1 // pred_check
      _
    $region39: #{tpu_custom_call.1} parent=1 // pred_check_branch
      %51 = sbr.rel (0) target = $region41
    $region40: #{tpu_custom_call.1} parent=1 // pred_region
      _
    $region41: #{tpu_custom_call.1} parent=1 // pred_fallthru
      _
    // Predicated region
    $region42: #{tpu_custom_call.1} parent=1 // pred_check
      _
    $region43: #{tpu_custom_call.1} parent=1 // pred_check_branch
      %53 = sbr.rel (0) target = $region45
    $region44: #{tpu_custom_call.1} parent=1 // pred_region
      _
    $region45: #{tpu_custom_call.1} parent=1 // pred_fallthru
      _
    // Predicated region
    $region46: #{tpu_custom_call.1} parent=1 // pred_check
      _
    $region47: #{tpu_custom_call.1} parent=1 // pred_check_branch
      %55 = sbr.rel (0) target = $region49
    $region48: #{tpu_custom_call.1} parent=1 // pred_region
      _
    $region49: #{tpu_custom_call.1} parent=1 // pred_fallthru
      _
    // Predicated region
    $region50: #{tpu_custom_call.1} parent=1 // pred_check
      _
    $region51: #{tpu_custom_call.1} parent=1 // pred_check_branch
      %57 = sbr.rel (0) target = $region53
    $region52: #{tpu_custom_call.1} parent=1 // pred_region
      _
    $region53: #{tpu_custom_call.1} parent=1 // pred_fallthru
      _
    // Predicated region
    $region54: #{tpu_custom_call.1} parent=1 // pred_check
      _
    $region55: #{tpu_custom_call.1} parent=1 // pred_check_branch
      %59 = sbr.rel (0) target = $region57
    $region56: #{tpu_custom_call.1} parent=1 // pred_region
      _
    $region57: #{tpu_custom_call.1} parent=1 // pred_fallthru
      _
    // Predicated region
    $region58: #{tpu_custom_call.1} parent=1 // pred_check
      _
    $region59: #{tpu_custom_call.1} parent=1 // pred_check_branch
      %61 = sbr.rel (0) target = $region61
    $region60: #{tpu_custom_call.1} parent=1 // pred_region
      _
    $region61: #{tpu_custom_call.1} parent=1 // pred_fallthru
      _
    // Predicated region
    $region62: #{tpu_custom_call.1} parent=1 // pred_check
      _
    $region63: #{tpu_custom_call.1} parent=1 // pred_check_branch
      %63 = sbr.rel (0) target = $region65
    $region64: #{tpu_custom_call.1} parent=1 // pred_region
      %64 = dma.done [#allocation4], 16
    $region65: #{tpu_custom_call.1} parent=1 // pred_fallthru
      _
    %v66 = vld [vmem:[%s0] sm:$0xff]
    %v67 = vld [vmem:[%s0 + $0x8] sm:$0xff]
    %v68 = vld [vmem:[%s0 + $0x10] sm:$0xff]
    %v69 = vld [vmem:[%s0 + $0x18] sm:$0xff]
    %v70 = vpack.c.bf16 %v67, %v66
    %v71 = vpack.c.bf16 %v69, %v68
    %v72 = vld [vmem:[%s1] sm:$0xff]
    %v73 = vld [vmem:[%s1 + $0x8] sm:$0xff]
    %v74 = vld [vmem:[%s1 + $0x10] sm:$0xff]
    %v75 = vld [vmem:[%s1 + $0x18] sm:$0xff]
    %v76 = vpack.c.bf16 %v73, %v72
    %v77 = vpack.c.bf16 %v75, %v74
    %v78 = vld [vmem:[%s2] sm:$0xf]
    %v79 = vld [vmem:[%s2 + $0x4] sm:$0xf]
    %v80 = vld [vmem:[%s2 + $0x8] sm:$0xf]
    %v81 = vld [vmem:[%s2 + $0xc] sm:$0xf]
    %v82 = vld [vmem:[%s3] sm:$0xf]
    %v83 = vld [vmem:[%s3 + $0x4] sm:$0xf]
    %v84 = vld [vmem:[%s3 + $0x8] sm:$0xf]
    %v85 = vld [vmem:[%s3 + $0xc] sm:$0xf]
    %v90 = vunpack.c.l.b16 %v82
    %v91 = vunpack.c.l.b16 %v83
    %v92 = vunpack.c.l.b16 %v84
    %v93 = vunpack.c.l.b16 %v85
    %v94 = vpack.c.b16 %v91, %v90
    %v95 = vpack.c.b16 %v93, %v92
    %vm98 = vcmask 261120
    %v100 = vsel %vm98, %v76, 0
    %v103 = vsel %vm98, %v77, 0
    %105 = vmatprep.subr.bf16.mxu0 0
    %106 = vmatpush1.bf16.msra.mxu0 %v94
    %107 = vmatprep.subr.bf16.mxu0 0
    %108 = vmatpush1.bf16.msra.mxu0 %v95
    %109 = vmatprep.subr.bf16.mxu0 0
    %110 = vmatpush1.bf16.msra.mxu0 0
    %111 = vmatprep.subr.bf16.mxu0 0
    %112 = vmatpush1.bf16.msra.mxu0 0
    %113 = vmatprep.subr.bf16.mxu0 0
    %114 = vmatpush1.bf16.msra.mxu0 0
    %115 = vmatprep.subr.bf16.mxu0 0
    %116 = vmatpush1.bf16.msra.mxu0 0
    %117 = vmatprep.subr.bf16.mxu0 0
    %118 = vmatpush1.bf16.msra.mxu0 0
    %119 = vmatprep.subr.bf16.mxu0 0
    %120 = vmatpush1.bf16.msra.mxu0 0
    %121 = vmatprep.subr.bf16.mxu0 0
    %122 = vmatpush1.bf16.msra.mxu0 0
    %123 = vmatprep.subr.bf16.mxu0 0
    %124 = vmatpush1.bf16.msra.mxu0 0
    %125 = vmatprep.subr.bf16.mxu0 0
    %126 = vmatpush1.bf16.msra.mxu0 0
    %127 = vmatprep.subr.bf16.mxu0 0
    %128 = vmatpush1.bf16.msra.mxu0 0
    %129 = vmatprep.subr.bf16.mxu0 0
    %130 = vmatpush1.bf16.msra.mxu0 0
    %131 = vmatprep.subr.bf16.mxu0 0
    %132 = vmatpush1.bf16.msra.mxu0 0
    %133 = vmatprep.subr.bf16.mxu0 0
    %134 = vmatpush1.bf16.msra.mxu0 0
    %135 = vmatprep.subr.bf16.mxu0 0
    %136 = vmatpush1.bf16.msra.mxu0 0
    %137 = vmatprep.mubr.bf16.mxu0 0
    %138 = vmatmul.mubr.bf16.gmra.mrb[0].mxu0 %v100
    %v139 = vpop.f32.mrb[0].mxu0
    %v140 = vadd.f32 0.0, %v139
    %v141 = vpop.f32.mrb[0].mxu0
    %v142 = vpop.f32.mrb[0].mxu0
    %v143 = vadd.f32 0.0, %v142
    %v144 = vpop.f32.mrb[0].mxu0
    %145 = vmatprep.mubr.bf16.mxu0 0
    %146 = vmatmul.mubr.bf16.gmra.mrb[0].mxu0 %v103
    %v147 = vpop.f32.mrb[0].mxu0
    %v148 = vadd.f32 0.0, %v147
    %v149 = vpop.f32.mrb[0].mxu0
    %v150 = vpop.f32.mrb[0].mxu0
    %v151 = vadd.f32 0.0, %v150
    %v152 = vpop.f32.mrb[0].mxu0
    %153 = vdwg.mxu0
    %v158 = vunpack.c.l.b16 %v78
    %v159 = vunpack.c.l.b16 %v79
    %v160 = vunpack.c.l.b16 %v80
    %v161 = vunpack.c.l.b16 %v81
    %v162 = vpack.c.b16 %v159, %v158
    %v163 = vpack.c.b16 %v161, %v160
    %v167 = vsel %vm98, %v70, 0
    %v170 = vsel %vm98, %v71, 0
    %172 = vmatprep.subr.bf16.mxu0 0
    %173 = vmatpush1.bf16.msra.mxu0 %v162
    %174 = vmatprep.subr.bf16.mxu0 0
    %175 = vmatpush1.bf16.msra.mxu0 %v163
    %176 = vmatprep.subr.bf16.mxu0 0
    %177 = vmatpush1.bf16.msra.mxu0 0
    %178 = vmatprep.subr.bf16.mxu0 0
    %179 = vmatpush1.bf16.msra.mxu0 0
    %180 = vmatprep.subr.bf16.mxu0 0
    %181 = vmatpush1.bf16.msra.mxu0 0
    %182 = vmatprep.subr.bf16.mxu0 0
    %183 = vmatpush1.bf16.msra.mxu0 0
    %184 = vmatprep.subr.bf16.mxu0 0
    %185 = vmatpush1.bf16.msra.mxu0 0
    %186 = vmatprep.subr.bf16.mxu0 0
    %187 = vmatpush1.bf16.msra.mxu0 0
    %188 = vmatprep.subr.bf16.mxu0 0
    %189 = vmatpush1.bf16.msra.mxu0 0
    %190 = vmatprep.subr.bf16.mxu0 0
    %191 = vmatpush1.bf16.msra.mxu0 0
    %192 = vmatprep.subr.bf16.mxu0 0
    %193 = vmatpush1.bf16.msra.mxu0 0
    %194 = vmatprep.subr.bf16.mxu0 0
    %195 = vmatpush1.bf16.msra.mxu0 0
    %196 = vmatprep.subr.bf16.mxu0 0
    %197 = vmatpush1.bf16.msra.mxu0 0
    %198 = vmatprep.subr.bf16.mxu0 0
    %199 = vmatpush1.bf16.msra.mxu0 0
    %200 = vmatprep.subr.bf16.mxu0 0
    %201 = vmatpush1.bf16.msra.mxu0 0
    %202 = vmatprep.subr.bf16.mxu0 0
    %203 = vmatpush1.bf16.msra.mxu0 0
    %204 = vmatprep.mubr.bf16.mxu0 0
    %205 = vmatmul.mubr.bf16.gmra.mrb[0].mxu0 %v167
    %v206 = vpop.f32.mrb[0].mxu0
    %v207 = vadd.f32 %v140, %v206
    %v208 = vpop.f32.mrb[0].mxu0
    %v209 = vpop.f32.mrb[0].mxu0
    %v210 = vadd.f32 %v143, %v209
    %v211 = vpop.f32.mrb[0].mxu0
    %212 = vmatprep.mubr.bf16.mxu0 0
    %213 = vmatmul.mubr.bf16.gmra.mrb[0].mxu0 %v170
    %v214 = vpop.f32.mrb[0].mxu0
    %v215 = vadd.f32 %v148, %v214
    %v216 = vpop.f32.mrb[0].mxu0
    %v217 = vpop.f32.mrb[0].mxu0
    %v218 = vadd.f32 %v151, %v217
    %v219 = vpop.f32.mrb[0].mxu0
    %220 = vdwg.mxu0
    %v221 = vld [vmem:[%s4] sm:$0x1]
    %v223 = vlaneseq
    %v224 = vshrl.u32 %v223, 7
    %v225 = vsub.s32 0, %v224
    %v226 = vrot.slane %v221, %v225
    %v228 = vadd.f32 %v207, %v226
    %v229 = vadd.f32 %v210, %v226
    %v230 = vadd.f32 %v215, %v226
    %v231 = vadd.f32 %v218, %v226
    %v232 = vmax.f32 %v228, 0.0
    %v233 = vmax.f32 %v229, 0.0
    %v234 = vmax.f32 %v230, 0.0
    %v235 = vmax.f32 %v231, 0.0
    %v236 = vpack.c.bf16 %v233, %v232
    %v237 = vpack.c.bf16 %v235, %v234
    %v238 = vld [vmem:[%s5] sm:$0xf]
    %v239 = vld [vmem:[%s5 + $0x4] sm:$0xf]
    %v240 = vld [vmem:[%s5 + $0x8] sm:$0xf]
    %v241 = vld [vmem:[%s5 + $0xc] sm:$0xf]
    %v242 = vld [vmem:[%s5 + $0x10] sm:$0xf]
    %v243 = vld [vmem:[%s5 + $0x14] sm:$0xf]
    %v244 = vld [vmem:[%s5 + $0x18] sm:$0xf]
    %v245 = vld [vmem:[%s5 + $0x1c] sm:$0xf]
    %v246 = vld [vmem:[%s6] sm:$0x1]
    %v248 = vlaneseq
    %v249 = vshrl.u32 %v248, 7
    %v250 = vsub.s32 0, %v249
    %v251 = vrot.slane %v246, %v250
    %v261 = vunpack.c.l.b16 %v238
    %v262 = vunpack.c.l.b16 %v239
    %v263 = vunpack.c.l.b16 %v240
    %v264 = vunpack.c.l.b16 %v241
    %v265 = vunpack.c.l.b16 %v242
    %v266 = vunpack.c.l.b16 %v243
    %v267 = vunpack.c.l.b16 %v244
    %v268 = vunpack.c.l.b16 %v245
    %v269 = vpack.c.b16 %v262, %v261
    %v270 = vpack.c.b16 %v264, %v263
    %v271 = vpack.c.b16 %v266, %v265
    %v272 = vpack.c.b16 %v268, %v267
    %vm277 = vcmask 523264
    %v279 = vsel %vm277, %v236, 0
    %v282 = vsel %vm277, %v237, 0
    %284 = vmatprep.subr.bf16.mxu0 0
    %285 = vmatpush1.bf16.msra.mxu0 %v269
    %286 = vmatprep.subr.bf16.mxu0 0
    %287 = vmatpush1.bf16.msra.mxu0 %v270
    %288 = vmatprep.subr.bf16.mxu0 0
    %289 = vmatpush1.bf16.msra.mxu0 %v271
    %290 = vmatprep.subr.bf16.mxu0 0
    %291 = vmatpush1.bf16.msra.mxu0 %v272
    %292 = vmatprep.subr.bf16.mxu0 0
    %293 = vmatpush1.bf16.msra.mxu0 0
    %294 = vmatprep.subr.bf16.mxu0 0
    %295 = vmatpush1.bf16.msra.mxu0 0
    %296 = vmatprep.subr.bf16.mxu0 0
    %297 = vmatpush1.bf16.msra.mxu0 0
    %298 = vmatprep.subr.bf16.mxu0 0
    %299 = vmatpush1.bf16.msra.mxu0 0
    %300 = vmatprep.subr.bf16.mxu0 0
    %301 = vmatpush1.bf16.msra.mxu0 0
    %302 = vmatprep.subr.bf16.mxu0 0
    %303 = vmatpush1.bf16.msra.mxu0 0
    %304 = vmatprep.subr.bf16.mxu0 0
    %305 = vmatpush1.bf16.msra.mxu0 0
    %306 = vmatprep.subr.bf16.mxu0 0
    %307 = vmatpush1.bf16.msra.mxu0 0
    %308 = vmatprep.subr.bf16.mxu0 0
    %309 = vmatpush1.bf16.msra.mxu0 0
    %310 = vmatprep.subr.bf16.mxu0 0
    %311 = vmatpush1.bf16.msra.mxu0 0
    %312 = vmatprep.subr.bf16.mxu0 0
    %313 = vmatpush1.bf16.msra.mxu0 0
    %314 = vmatprep.subr.bf16.mxu0 0
    %315 = vmatpush1.bf16.msra.mxu0 0
    %316 = vmatprep.mubr.bf16.mxu0 0
    %317 = vmatmul.mubr.bf16.gmra.mrb[0].mxu0 %v279
    %v318 = vpop.f32.mrb[0].mxu0
    %v319 = vadd.f32 %v251, %v318
    %v320 = vpop.f32.mrb[0].mxu0
    %v321 = vpop.f32.mrb[0].mxu0
    %v322 = vadd.f32 %v251, %v321
    %v323 = vpop.f32.mrb[0].mxu0
    %324 = vmatprep.mubr.bf16.mxu0 0
    %325 = vmatmul.mubr.bf16.gmra.mrb[0].mxu0 %v282
    %v326 = vpop.f32.mrb[0].mxu0
    %v327 = vadd.f32 %v251, %v326
    %v328 = vpop.f32.mrb[0].mxu0
    %v329 = vpop.f32.mrb[0].mxu0
    %v330 = vadd.f32 %v251, %v329
    %v331 = vpop.f32.mrb[0].mxu0
    %332 = vdwg.mxu0
    %v333 = vmax.f32 %v319, 0.0
    %v334 = vmax.f32 %v322, 0.0
    %v335 = vmax.f32 %v327, 0.0
    %v336 = vmax.f32 %v330, 0.0
    %v337 = vpack.c.bf16 %v334, %v333
    %v338 = vpack.c.bf16 %v336, %v335
    %v339 = vld [vmem:[%s7] sm:$0xf]
    %v340 = vld [vmem:[%s7 + $0x4] sm:$0xf]
    %v341 = vld [vmem:[%s7 + $0x8] sm:$0xf]
    %v342 = vld [vmem:[%s7 + $0xc] sm:$0xf]
    %v343 = vld [vmem:[#allocation3] sm:$0x1]
    %v345 = vlaneseq
    %v346 = vshrl.u32 %v345, 7
    %v347 = vsub.s32 0, %v346
    %v348 = vrot.slane %v343, %v347
    %v354 = vunpack.c.l.b16 %v339
    %v355 = vunpack.c.l.b16 %v340
    %v356 = vunpack.c.l.b16 %v341
    %v357 = vunpack.c.l.b16 %v342
    %v358 = vpack.c.b16 %v355, %v354
    %v359 = vpack.c.b16 %v357, %v356
    %v363 = vsel %vm98, %v337, 0
    %v366 = vsel %vm98, %v338, 0
    %368 = vmatprep.subr.bf16.mxu0 0
    %369 = vmatpush1.bf16.msra.mxu0 %v358
    %370 = vmatprep.subr.bf16.mxu0 0
    %371 = vmatpush1.bf16.msra.mxu0 %v359
    %372 = vmatprep.subr.bf16.mxu0 0
    %373 = vmatpush1.bf16.msra.mxu0 0
    %374 = vmatprep.subr.bf16.mxu0 0
    %375 = vmatpush1.bf16.msra.mxu0 0
    %376 = vmatprep.subr.bf16.mxu0 0
    %377 = vmatpush1.bf16.msra.mxu0 0
    %378 = vmatprep.subr.bf16.mxu0 0
    %379 = vmatpush1.bf16.msra.mxu0 0
    %380 = vmatprep.subr.bf16.mxu0 0
    %381 = vmatpush1.bf16.msra.mxu0 0
    %382 = vmatprep.subr.bf16.mxu0 0
    %383 = vmatpush1.bf16.msra.mxu0 0
    %384 = vmatprep.subr.bf16.mxu0 0
    %385 = vmatpush1.bf16.msra.mxu0 0
    %386 = vmatprep.subr.bf16.mxu0 0
    %387 = vmatpush1.bf16.msra.mxu0 0
    %388 = vmatprep.subr.bf16.mxu0 0
    %389 = vmatpush1.bf16.msra.mxu0 0
    %390 = vmatprep.subr.bf16.mxu0 0
    %391 = vmatpush1.bf16.msra.mxu0 0
    %392 = vmatprep.subr.bf16.mxu0 0
    %393 = vmatpush1.bf16.msra.mxu0 0
    %394 = vmatprep.subr.bf16.mxu0 0
    %395 = vmatpush1.bf16.msra.mxu0 0
    %396 = vmatprep.subr.bf16.mxu0 0
    %397 = vmatpush1.bf16.msra.mxu0 0
    %398 = vmatprep.subr.bf16.mxu0 0
    %399 = vmatpush1.bf16.msra.mxu0 0
    %400 = vmatprep.mubr.bf16.mxu0 0
    %401 = vmatmul.mubr.bf16.gmra.mrb[0].mxu0 %v363
    %v402 = vpop.f32.mrb[0].mxu0
    %v403 = vadd.f32 %v348, %v402
    %v404 = vpop.f32.mrb[0].mxu0
    %v405 = vpop.f32.mrb[0].mxu0
    %v406 = vadd.f32 %v348, %v405
    %v407 = vpop.f32.mrb[0].mxu0
    %408 = vmatprep.mubr.bf16.mxu0 0
    %409 = vmatmul.mubr.bf16.gmra.mrb[0].mxu0 %v366
    %v410 = vpop.f32.mrb[0].mxu0
    %v411 = vadd.f32 %v348, %v410
    %v412 = vpop.f32.mrb[0].mxu0
    %v413 = vpop.f32.mrb[0].mxu0
    %v414 = vadd.f32 %v348, %v413
    %v415 = vpop.f32.mrb[0].mxu0
    %416 = vdwg.mxu0
    %v417 = vmax.f32 %v403, 0.0
    %v418 = vmax.f32 %v406, 0.0
    %v419 = vmax.f32 %v411, 0.0
    %v420 = vmax.f32 %v414, 0.0
    %v421 = vpack.c.bf16 %v418, %v417
    %v422 = vpack.c.bf16 %v420, %v419
    %v423 = vld [vmem:[%s9] sm:$0xf]
    %v424 = vld [vmem:[%s9 + $0x4] sm:$0xf]
    %v425 = vld [vmem:[%s9 + $0x8] sm:$0xf]
    %v426 = vld [vmem:[%s9 + $0xc] sm:$0xf]
    %v427 = vld [vmem:[%s10] sm:$0x1]
    %v429 = vlaneseq
    %v430 = vshrl.u32 %v429, 7
    %v431 = vsub.s32 0, %v430
    %v432 = vrot.slane %v427, %v431
    %v438 = vunpack.c.l.b16 %v423
    %v439 = vunpack.c.l.b16 %v424
    %v440 = vunpack.c.l.b16 %v425
    %v441 = vunpack.c.l.b16 %v426
    %v442 = vpack.c.b16 %v439, %v438
    %v443 = vpack.c.b16 %v441, %v440
    %v447 = vsel %vm98, %v421, 0
    %v450 = vsel %vm98, %v422, 0
    %452 = vmatprep.subr.bf16.mxu0 0
    %453 = vmatpush1.bf16.msra.mxu0 %v442
    %454 = vmatprep.subr.bf16.mxu0 0
    %455 = vmatpush1.bf16.msra.mxu0 %v443
    %456 = vmatprep.subr.bf16.mxu0 0
    %457 = vmatpush1.bf16.msra.mxu0 0
    %458 = vmatprep.subr.bf16.mxu0 0
    %459 = vmatpush1.bf16.msra.mxu0 0
    %460 = vmatprep.subr.bf16.mxu0 0
    %461 = vmatpush1.bf16.msra.mxu0 0
    %462 = vmatprep.subr.bf16.mxu0 0
    %463 = vmatpush1.bf16.msra.mxu0 0
    %464 = vmatprep.subr.bf16.mxu0 0
    %465 = vmatpush1.bf16.msra.mxu0 0
    %466 = vmatprep.subr.bf16.mxu0 0
    %467 = vmatpush1.bf16.msra.mxu0 0
    %468 = vmatprep.subr.bf16.mxu0 0
    %469 = vmatpush1.bf16.msra.mxu0 0
    %470 = vmatprep.subr.bf16.mxu0 0
    %471 = vmatpush1.bf16.msra.mxu0 0
    %472 = vmatprep.subr.bf16.mxu0 0
    %473 = vmatpush1.bf16.msra.mxu0 0
    %474 = vmatprep.subr.bf16.mxu0 0
    %475 = vmatpush1.bf16.msra.mxu0 0
    %476 = vmatprep.subr.bf16.mxu0 0
    %477 = vmatpush1.bf16.msra.mxu0 0
    %478 = vmatprep.subr.bf16.mxu0 0
    %479 = vmatpush1.bf16.msra.mxu0 0
    %480 = vmatprep.subr.bf16.mxu0 0
    %481 = vmatpush1.bf16.msra.mxu0 0
    %482 = vmatprep.subr.bf16.mxu0 0
    %483 = vmatpush1.bf16.msra.mxu0 0
    %484 = vmatprep.mubr.bf16.mxu0 0
    %485 = vmatmul.mubr.bf16.gmra.mrb[0].mxu0 %v447
    %v486 = vpop.f32.mrb[0].mxu0
    %v487 = vadd.f32 %v432, %v486
    %v488 = vpop.f32.mrb[0].mxu0
    %v489 = vpop.f32.mrb[0].mxu0
    %v490 = vadd.f32 %v432, %v489
    %v491 = vpop.f32.mrb[0].mxu0
    %492 = vmatprep.mubr.bf16.mxu0 0
    %493 = vmatmul.mubr.bf16.gmra.mrb[0].mxu0 %v450
    %v494 = vpop.f32.mrb[0].mxu0
    %v495 = vadd.f32 %v432, %v494
    %v496 = vpop.f32.mrb[0].mxu0
    %v497 = vpop.f32.mrb[0].mxu0
    %v498 = vadd.f32 %v432, %v497
    %v499 = vpop.f32.mrb[0].mxu0
    %500 = vdwg.mxu0
    %v501 = vmax.f32 %v487, 0.0
    %v502 = vmax.f32 %v490, 0.0
    %v503 = vmax.f32 %v495, 0.0
    %v504 = vmax.f32 %v498, 0.0
    %v505 = vpack.c.bf16 %v502, %v501
    %v506 = vpack.c.bf16 %v504, %v503
    %v507 = vld [vmem:[%s11] sm:$0x1]
    %v508 = vld [vmem:[#allocation2] sm:$0x1]
    %510 = vset.pattern.permute.xlu0 0
    %511 = vperm.xlu0 %510, %v508
    %v512 = vpop.permute.xlu0 %511
    %v514 = vlaneseq
    %v515 = vshrl.u32 %v514, 7
    %v516 = vsub.s32 0, %v515
    %v517 = vrot.slane %v512, %v516
    %vm518 = vcmask 130048
    %v520 = vsel %vm518, %v507, 0
    %v523 = vsel %vm518, %v505, 0
    %525 = vmatprep.subr.bf16.mxu0 0
    %526 = vmatpush1.bf16.xpose.msra.mxu0 %v523
    %527 = vmatprep.subr.bf16.mxu0 0
    %528 = vmatpush1.bf16.xpose.msra.mxu0 0
    %529 = vmatprep.subr.bf16.mxu0 0
    %530 = vmatpush1.bf16.xpose.msra.mxu0 0
    %531 = vmatprep.subr.bf16.mxu0 0
    %532 = vmatpush1.bf16.xpose.msra.mxu0 0
    %533 = vmatprep.subr.bf16.mxu0 0
    %534 = vmatpush1.bf16.xpose.msra.mxu0 0
    %535 = vmatprep.subr.bf16.mxu0 0
    %536 = vmatpush1.bf16.xpose.msra.mxu0 0
    %537 = vmatprep.subr.bf16.mxu0 0
    %538 = vmatpush1.bf16.xpose.msra.mxu0 0
    %539 = vmatprep.subr.bf16.mxu0 0
    %540 = vmatpush1.bf16.xpose.msra.mxu0 0
    %541 = vmatprep.subr.bf16.mxu0 0
    %542 = vmatpush1.bf16.xpose.msra.mxu0 0
    %543 = vmatprep.subr.bf16.mxu0 0
    %544 = vmatpush1.bf16.xpose.msra.mxu0 0
    %545 = vmatprep.subr.bf16.mxu0 0
    %546 = vmatpush1.bf16.xpose.msra.mxu0 0
    %547 = vmatprep.subr.bf16.mxu0 0
    %548 = vmatpush1.bf16.xpose.msra.mxu0 0
    %549 = vmatprep.subr.bf16.mxu0 0
    %550 = vmatpush1.bf16.xpose.msra.mxu0 0
    %551 = vmatprep.subr.bf16.mxu0 0
    %552 = vmatpush1.bf16.xpose.msra.mxu0 0
    %553 = vmatprep.subr.bf16.mxu0 0
    %554 = vmatpush1.bf16.xpose.msra.mxu0 0
    %555 = vmatprep.subr.bf16.mxu0 0
    %556 = vmatpush1.bf16.xpose.msra.mxu0 0
    %557 = vmatprep.mubr.bf16.mxu0 0
    %558 = vmatmul.mubr.bf16.gmra.mrb[0].mxu0 %v520
    %v559 = vpop.f32.mrb[0].mxu0
    %v560 = vadd.f32 %v517, %v559
    %v561 = vpop.f32.mrb[0].mxu0
    %v562 = vpop.f32.mrb[0].mxu0
    %v563 = vpop.f32.mrb[0].mxu0
    %564 = vdwg.mxu0
    %v566 = vsel %vm518, %v506, 0
    %568 = vmatprep.subr.bf16.mxu0 0
    %569 = vmatpush1.bf16.xpose.msra.mxu0 %v566
    %570 = vmatprep.subr.bf16.mxu0 0
    %571 = vmatpush1.bf16.xpose.msra.mxu0 0
    %572 = vmatprep.subr.bf16.mxu0 0
    %573 = vmatpush1.bf16.xpose.msra.mxu0 0
    %574 = vmatprep.subr.bf16.mxu0 0
    %575 = vmatpush1.bf16.xpose.msra.mxu0 0
    %576 = vmatprep.subr.bf16.mxu0 0
    %577 = vmatpush1.bf16.xpose.msra.mxu0 0
    %578 = vmatprep.subr.bf16.mxu0 0
    %579 = vmatpush1.bf16.xpose.msra.mxu0 0
    %580 = vmatprep.subr.bf16.mxu0 0
    %581 = vmatpush1.bf16.xpose.msra.mxu0 0
    %582 = vmatprep.subr.bf16.mxu0 0
    %583 = vmatpush1.bf16.xpose.msra.mxu0 0
    %584 = vmatprep.subr.bf16.mxu0 0
    %585 = vmatpush1.bf16.xpose.msra.mxu0 0
    %586 = vmatprep.subr.bf16.mxu0 0
    %587 = vmatpush1.bf16.xpose.msra.mxu0 0
    %588 = vmatprep.subr.bf16.mxu0 0
    %589 = vmatpush1.bf16.xpose.msra.mxu0 0
    %590 = vmatprep.subr.bf16.mxu0 0
    %591 = vmatpush1.bf16.xpose.msra.mxu0 0
    %592 = vmatprep.subr.bf16.mxu0 0
    %593 = vmatpush1.bf16.xpose.msra.mxu0 0
    %594 = vmatprep.subr.bf16.mxu0 0
    %595 = vmatpush1.bf16.xpose.msra.mxu0 0
    %596 = vmatprep.subr.bf16.mxu0 0
    %597 = vmatpush1.bf16.xpose.msra.mxu0 0
    %598 = vmatprep.subr.bf16.mxu0 0
    %599 = vmatpush1.bf16.xpose.msra.mxu0 0
    %600 = vmatprep.mubr.bf16.mxu0 0
    %601 = vmatmul.mubr.bf16.gmra.mrb[0].mxu0 %v520
    %v602 = vpop.f32.mrb[0].mxu0
    %v603 = vadd.f32 %v517, %v602
    %v604 = vpop.f32.mrb[0].mxu0
    %v605 = vpop.f32.mrb[0].mxu0
    %v606 = vpop.f32.mrb[0].mxu0
    %607 = vdwg.mxu0
    %v608 = vlaneseq
    %v609 = vand.u32 %v608, 127
    %vm610 = vcmp.eq.s32.totalorder %v609, 0
    %vm611 = vcmp.ge.s32.totalorder %v609, 9
    %vm612 = vmor %vm610, %vm611
    %v613 = vsel %vm612, -1e+30, %v560
    %v614 = vsel %vm612, -1e+30, %v603
    %vm615 = vcmask 122880
    %v616 = vsel %vm615, %v613, -inf
    %617 = vmax.xlane.f32.xlu0 %v616
    %v618 = vpop.xlane.xlu0 %617
    %v619 = vsel %vm615, %v614, -inf
    %620 = vmax.xlane.f32.xlu0 %v619
    %v621 = vpop.xlane.xlu0 %620
    %v622 = vsub.f32 %v613, %v618
    %v623 = vsub.f32 %v614, %v621
    %v624 = vmul.f32 %v622, 1.442695
    %v625 = vpow.pop %v624
    %v626 = vmul.f32 %v623, 1.442695
    %v627 = vpow.pop %v626
    %v628 = vsel %vm615, %v625, 0.0
    %629 = vadd.xlane.f32.xlu0 %v628
    %v630 = vpop.xlane.xlu0 %629
    %v631 = vsel %vm615, %v627, 0.0
    %632 = vadd.xlane.f32.xlu0 %v631
    %v633 = vpop.xlane.xlu0 %632
    %v634 = vrcp.pop %v630
    %v635 = vrcp.pop %v633
    %v636 = vmul.f32 %v625, %v634
    %v637 = vmul.f32 %v627, %v635
    %v639 = vsel %vm518, %v636, 0
    %641 = vmatprep.subr.mxu0 0.0
    %642 = vmatpush1.msra.mxu0 %v66
    %643 = vmatprep.subr.mxu0 0.0
    %644 = vmatpush1.msra.mxu0 %v67
    %645 = vmatprep.subr.mxu0 0.0
    %646 = vmatpush1.msra.mxu0 0.0
    %647 = vmatprep.subr.mxu0 0.0
    %648 = vmatpush1.msra.mxu0 0.0
    %649 = vmatprep.subr.mxu0 0.0
    %650 = vmatpush1.msra.mxu0 0.0
    %651 = vmatprep.subr.mxu0 0.0
    %652 = vmatpush1.msra.mxu0 0.0
    %653 = vmatprep.subr.mxu0 0.0
    %654 = vmatpush1.msra.mxu0 0.0
    %655 = vmatprep.subr.mxu0 0.0
    %656 = vmatpush1.msra.mxu0 0.0
    %657 = vmatprep.subr.mxu0 0.0
    %658 = vmatpush1.msra.mxu0 0.0
    %659 = vmatprep.subr.mxu0 0.0
    %660 = vmatpush1.msra.mxu0 0.0
    %661 = vmatprep.subr.mxu0 0.0
    %662 = vmatpush1.msra.mxu0 0.0
    %663 = vmatprep.subr.mxu0 0.0
    %664 = vmatpush1.msra.mxu0 0.0
    %665 = vmatprep.subr.mxu0 0.0
    %666 = vmatpush1.msra.mxu0 0.0
    %667 = vmatprep.subr.mxu0 0.0
    %668 = vmatpush1.msra.mxu0 0.0
    %669 = vmatprep.subr.mxu0 0.0
    %670 = vmatpush1.msra.mxu0 0.0
    %671 = vmatprep.subr.mxu0 0.0
    %672 = vmatpush1.msra.mxu0 0.0
    %673 = vmatprep.subr.mxu0 0.0
    %674 = vmatpush1.msra.mxu0 0.0
    %675 = vmatprep.subr.mxu0 0.0
    %676 = vmatpush1.msra.mxu0 0.0
    %677 = vmatprep.subr.mxu0 0.0
    %678 = vmatpush1.msra.mxu0 0.0
    %679 = vmatprep.subr.mxu0 0.0
    %680 = vmatpush1.msra.mxu0 0.0
    %681 = vmatprep.subr.mxu0 0.0
    %682 = vmatpush1.msra.mxu0 0.0
    %683 = vmatprep.subr.mxu0 0.0
    %684 = vmatpush1.msra.mxu0 0.0
    %685 = vmatprep.subr.mxu0 0.0
    %686 = vmatpush1.msra.mxu0 0.0
    %687 = vmatprep.subr.mxu0 0.0
    %688 = vmatpush1.msra.mxu0 0.0
    %689 = vmatprep.subr.mxu0 0.0
    %690 = vmatpush1.msra.mxu0 0.0
    %691 = vmatprep.subr.mxu0 0.0
    %692 = vmatpush1.msra.mxu0 0.0
    %693 = vmatprep.subr.mxu0 0.0
    %694 = vmatpush1.msra.mxu0 0.0
    %695 = vmatprep.subr.mxu0 0.0
    %696 = vmatpush1.msra.mxu0 0.0
    %697 = vmatprep.subr.mxu0 0.0
    %698 = vmatpush1.msra.mxu0 0.0
    %699 = vmatprep.subr.mxu0 0.0
    %700 = vmatpush1.msra.mxu0 0.0
    %701 = vmatprep.subr.mxu0 0.0
    %702 = vmatpush1.msra.mxu0 0.0
    %703 = vmatprep.subr.mxu0 0.0
    %704 = vmatpush1.msra.mxu0 0.0
    %705 = vmatprep.mubr.f32.mxu0 0.0
    %706 = vmatmul.mubr.f32.gmra.mrb[0].mxu0 %v639
    %v707 = vpop.f32.mrb[0].mxu0
    %v708 = vadd.f32 0.0, %v707
    %v709 = vpop.f32.mrb[0].mxu0
    %710 = vdwg.mxu0
    %v712 = vsel %vm518, %v637, 0
    %714 = vmatprep.subr.mxu0 0.0
    %715 = vmatpush1.msra.mxu0 %v68
    %716 = vmatprep.subr.mxu0 0.0
    %717 = vmatpush1.msra.mxu0 %v69
    %718 = vmatprep.subr.mxu0 0.0
    %719 = vmatpush1.msra.mxu0 0.0
    %720 = vmatprep.subr.mxu0 0.0
    %721 = vmatpush1.msra.mxu0 0.0
    %722 = vmatprep.subr.mxu0 0.0
    %723 = vmatpush1.msra.mxu0 0.0
    %724 = vmatprep.subr.mxu0 0.0
    %725 = vmatpush1.msra.mxu0 0.0
    %726 = vmatprep.subr.mxu0 0.0
    %727 = vmatpush1.msra.mxu0 0.0
    %728 = vmatprep.subr.mxu0 0.0
    %729 = vmatpush1.msra.mxu0 0.0
    %730 = vmatprep.subr.mxu0 0.0
    %731 = vmatpush1.msra.mxu0 0.0
    %732 = vmatprep.subr.mxu0 0.0
    %733 = vmatpush1.msra.mxu0 0.0
    %734 = vmatprep.subr.mxu0 0.0
    %735 = vmatpush1.msra.mxu0 0.0
    %736 = vmatprep.subr.mxu0 0.0
    %737 = vmatpush1.msra.mxu0 0.0
    %738 = vmatprep.subr.mxu0 0.0
    %739 = vmatpush1.msra.mxu0 0.0
    %740 = vmatprep.subr.mxu0 0.0
    %741 = vmatpush1.msra.mxu0 0.0
    %742 = vmatprep.subr.mxu0 0.0
    %743 = vmatpush1.msra.mxu0 0.0
    %744 = vmatprep.subr.mxu0 0.0
    %745 = vmatpush1.msra.mxu0 0.0
    %746 = vmatprep.subr.mxu0 0.0
    %747 = vmatpush1.msra.mxu0 0.0
    %748 = vmatprep.subr.mxu0 0.0
    %749 = vmatpush1.msra.mxu0 0.0
    %750 = vmatprep.subr.mxu0 0.0
    %751 = vmatpush1.msra.mxu0 0.0
    %752 = vmatprep.subr.mxu0 0.0
    %753 = vmatpush1.msra.mxu0 0.0
    %754 = vmatprep.subr.mxu0 0.0
    %755 = vmatpush1.msra.mxu0 0.0
    %756 = vmatprep.subr.mxu0 0.0
    %757 = vmatpush1.msra.mxu0 0.0
    %758 = vmatprep.subr.mxu0 0.0
    %759 = vmatpush1.msra.mxu0 0.0
    %760 = vmatprep.subr.mxu0 0.0
    %761 = vmatpush1.msra.mxu0 0.0
    %762 = vmatprep.subr.mxu0 0.0
    %763 = vmatpush1.msra.mxu0 0.0
    %764 = vmatprep.subr.mxu0 0.0
    %765 = vmatpush1.msra.mxu0 0.0
    %766 = vmatprep.subr.mxu0 0.0
    %767 = vmatpush1.msra.mxu0 0.0
    %768 = vmatprep.subr.mxu0 0.0
    %769 = vmatpush1.msra.mxu0 0.0
    %770 = vmatprep.subr.mxu0 0.0
    %771 = vmatpush1.msra.mxu0 0.0
    %772 = vmatprep.subr.mxu0 0.0
    %773 = vmatpush1.msra.mxu0 0.0
    %774 = vmatprep.subr.mxu0 0.0
    %775 = vmatpush1.msra.mxu0 0.0
    %776 = vmatprep.subr.mxu0 0.0
    %777 = vmatpush1.msra.mxu0 0.0
    %778 = vmatprep.mubr.f32.mxu0 0.0
    %779 = vmatmul.mubr.f32.gmra.mrb[0].mxu0 %v712
    %v780 = vpop.f32.mrb[0].mxu0
    %v781 = vadd.f32 0.0, %v780
    %v782 = vpop.f32.mrb[0].mxu0
    %783 = vdwg.mxu0
    %v784 = vld [vmem:[%s13] sm:$0xff]
    %v785 = vld [vmem:[%s13 + $0x8] sm:$0xff]
    %v786 = vld [vmem:[%s13 + $0x10] sm:$0xff]
    %v787 = vld [vmem:[%s13 + $0x18] sm:$0xff]
    %v788 = vld [vmem:[%s14] sm:$0x1]
    %v790 = vsel %vm98, %v708, 0
    %792 = vmatprep.subr.mxu0 0.0
    %793 = vmatpush1.msra.mxu0 %v784
    %794 = vmatprep.subr.mxu0 0.0
    %795 = vmatpush1.msra.mxu0 %v785
    %796 = vmatprep.subr.mxu0 0.0
    %797 = vmatpush1.msra.mxu0 %v786
    %798 = vmatprep.subr.mxu0 0.0
    %799 = vmatpush1.msra.mxu0 %v787
    %800 = vmatprep.subr.mxu0 0.0
    %801 = vmatpush1.msra.mxu0 0.0
    %802 = vmatprep.subr.mxu0 0.0
    %803 = vmatpush1.msra.mxu0 0.0
    %804 = vmatprep.subr.mxu0 0.0
    %805 = vmatpush1.msra.mxu0 0.0
    %806 = vmatprep.subr.mxu0 0.0
    %807 = vmatpush1.msra.mxu0 0.0
    %808 = vmatprep.subr.mxu0 0.0
    %809 = vmatpush1.msra.mxu0 0.0
    %810 = vmatprep.subr.mxu0 0.0
    %811 = vmatpush1.msra.mxu0 0.0
    %812 = vmatprep.subr.mxu0 0.0
    %813 = vmatpush1.msra.mxu0 0.0
    %814 = vmatprep.subr.mxu0 0.0
    %815 = vmatpush1.msra.mxu0 0.0
    %816 = vmatprep.subr.mxu0 0.0
    %817 = vmatpush1.msra.mxu0 0.0
    %818 = vmatprep.subr.mxu0 0.0
    %819 = vmatpush1.msra.mxu0 0.0
    %820 = vmatprep.subr.mxu0 0.0
    %821 = vmatpush1.msra.mxu0 0.0
    %822 = vmatprep.subr.mxu0 0.0
    %823 = vmatpush1.msra.mxu0 0.0
    %824 = vmatprep.subr.mxu0 0.0
    %825 = vmatpush1.msra.mxu0 0.0
    %826 = vmatprep.subr.mxu0 0.0
    %827 = vmatpush1.msra.mxu0 0.0
    %828 = vmatprep.subr.mxu0 0.0
    %829 = vmatpush1.msra.mxu0 0.0
    %830 = vmatprep.subr.mxu0 0.0
    %831 = vmatpush1.msra.mxu0 0.0
    %832 = vmatprep.subr.mxu0 0.0
    %833 = vmatpush1.msra.mxu0 0.0
    %834 = vmatprep.subr.mxu0 0.0
    %835 = vmatpush1.msra.mxu0 0.0
    %836 = vmatprep.subr.mxu0 0.0
    %837 = vmatpush1.msra.mxu0 0.0
    %838 = vmatprep.subr.mxu0 0.0
    %839 = vmatpush1.msra.mxu0 0.0
    %840 = vmatprep.subr.mxu0 0.0
    %841 = vmatpush1.msra.mxu0 0.0
    %842 = vmatprep.subr.mxu0 0.0
    %843 = vmatpush1.msra.mxu0 0.0
    %844 = vmatprep.subr.mxu0 0.0
    %845 = vmatpush1.msra.mxu0 0.0
    %846 = vmatprep.subr.mxu0 0.0
    %847 = vmatpush1.msra.mxu0 0.0
    %848 = vmatprep.subr.mxu0 0.0
    %849 = vmatpush1.msra.mxu0 0.0
    %850 = vmatprep.subr.mxu0 0.0
    %851 = vmatpush1.msra.mxu0 0.0
    %852 = vmatprep.subr.mxu0 0.0
    %853 = vmatpush1.msra.mxu0 0.0
    %854 = vmatprep.subr.mxu0 0.0
    %855 = vmatpush1.msra.mxu0 0.0
    %856 = vmatprep.mubr.f32.mxu0 0.0
    %857 = vmatmul.mubr.f32.gmra.mrb[0].mxu0 %v790
    %v858 = vpop.f32.mrb[0].mxu0
    %v859 = vadd.f32 %v788, %v858
    %v860 = vpop.f32.mrb[0].mxu0
    %861 = vdwg.mxu0
    %v863 = vsel %vm98, %v781, 0
    %865 = vmatprep.subr.mxu0 0.0
    %866 = vmatpush1.msra.mxu0 %v784
    %867 = vmatprep.subr.mxu0 0.0
    %868 = vmatpush1.msra.mxu0 %v785
    %869 = vmatprep.subr.mxu0 0.0
    %870 = vmatpush1.msra.mxu0 %v786
    %871 = vmatprep.subr.mxu0 0.0
    %872 = vmatpush1.msra.mxu0 %v787
    %873 = vmatprep.subr.mxu0 0.0
    %874 = vmatpush1.msra.mxu0 0.0
    %875 = vmatprep.subr.mxu0 0.0
    %876 = vmatpush1.msra.mxu0 0.0
    %877 = vmatprep.subr.mxu0 0.0
    %878 = vmatpush1.msra.mxu0 0.0
    %879 = vmatprep.subr.mxu0 0.0
    %880 = vmatpush1.msra.mxu0 0.0
    %881 = vmatprep.subr.mxu0 0.0
    %882 = vmatpush1.msra.mxu0 0.0
    %883 = vmatprep.subr.mxu0 0.0
    %884 = vmatpush1.msra.mxu0 0.0
    %885 = vmatprep.subr.mxu0 0.0
    %886 = vmatpush1.msra.mxu0 0.0
    %887 = vmatprep.subr.mxu0 0.0
    %888 = vmatpush1.msra.mxu0 0.0
    %889 = vmatprep.subr.mxu0 0.0
    %890 = vmatpush1.msra.mxu0 0.0
    %891 = vmatprep.subr.mxu0 0.0
    %892 = vmatpush1.msra.mxu0 0.0
    %893 = vmatprep.subr.mxu0 0.0
    %894 = vmatpush1.msra.mxu0 0.0
    %895 = vmatprep.subr.mxu0 0.0
    %896 = vmatpush1.msra.mxu0 0.0
    %897 = vmatprep.subr.mxu0 0.0
    %898 = vmatpush1.msra.mxu0 0.0
    %899 = vmatprep.subr.mxu0 0.0
    %900 = vmatpush1.msra.mxu0 0.0
    %901 = vmatprep.subr.mxu0 0.0
    %902 = vmatpush1.msra.mxu0 0.0
    %903 = vmatprep.subr.mxu0 0.0
    %904 = vmatpush1.msra.mxu0 0.0
    %905 = vmatprep.subr.mxu0 0.0
    %906 = vmatpush1.msra.mxu0 0.0
    %907 = vmatprep.subr.mxu0 0.0
    %908 = vmatpush1.msra.mxu0 0.0
    %909 = vmatprep.subr.mxu0 0.0
    %910 = vmatpush1.msra.mxu0 0.0
    %911 = vmatprep.subr.mxu0 0.0
    %912 = vmatpush1.msra.mxu0 0.0
    %913 = vmatprep.subr.mxu0 0.0
    %914 = vmatpush1.msra.mxu0 0.0
    %915 = vmatprep.subr.mxu0 0.0
    %916 = vmatpush1.msra.mxu0 0.0
    %917 = vmatprep.subr.mxu0 0.0
    %918 = vmatpush1.msra.mxu0 0.0
    %919 = vmatprep.subr.mxu0 0.0
    %920 = vmatpush1.msra.mxu0 0.0
    %921 = vmatprep.subr.mxu0 0.0
    %922 = vmatpush1.msra.mxu0 0.0
    %923 = vmatprep.subr.mxu0 0.0
    %924 = vmatpush1.msra.mxu0 0.0
    %925 = vmatprep.subr.mxu0 0.0
    %926 = vmatpush1.msra.mxu0 0.0
    %927 = vmatprep.subr.mxu0 0.0
    %928 = vmatpush1.msra.mxu0 0.0
    %929 = vmatprep.mubr.f32.mxu0 0.0
    %930 = vmatmul.mubr.f32.gmra.mrb[0].mxu0 %v863
    %v931 = vpop.f32.mrb[0].mxu0
    %v932 = vadd.f32 %v788, %v931
    %v933 = vpop.f32.mrb[0].mxu0
    %934 = vdwg.mxu0
    %vm935 = vcmask 24576
    %v936 = vsel %vm935, %v859, -inf
    %937 = vmax.xlane.f32.xlu0 %v936
    %v938 = vpop.xlane.xlu0 %937
    %v939 = vsel %vm935, %v932, -inf
    %940 = vmax.xlane.f32.xlu0 %v939
    %v941 = vpop.xlane.xlu0 %940
    %v942 = vsub.f32 %v859, %v938
    %v943 = vsub.f32 %v932, %v941
    %v944 = vmul.f32 %v942, 1.442695
    %v945 = vpow.pop %v944
    %v946 = vmul.f32 %v943, 1.442695
    %v947 = vpow.pop %v946
    %v948 = vsel %vm935, %v945, 0.0
    %949 = vadd.xlane.f32.xlu0 %v948
    %v950 = vpop.xlane.xlu0 %949
    %v951 = vsel %vm935, %v947, 0.0
    %952 = vadd.xlane.f32.xlu0 %v951
    %v953 = vpop.xlane.xlu0 %952
    %v954 = vrcp.pop %v950
    %v955 = vmul.f32 %v945, %v954
    %v956 = vrcp.pop %v953
    %v957 = vmul.f32 %v947, %v956
    %960 = vrot.lane.b32.xlu0 %v859, 4
    %v961 = vpop.permute.xlu0 %960
    %962 = vrot.lane.b32.xlu0 %v932, 4
    %v963 = vpop.permute.xlu0 %962
    %vm966 = vcmask 31744
    %v967 = vsel %vm966, %v955, %v961
    %v968 = vsel %vm966, %v957, %v963
    %vm969 = vcmask 57344
    %970 = vst.msk [vmem:[#allocation6] sm:$0x1] %vm969, %v967
    %971 = vst.msk [vmem:[#allocation6 + $0x1] sm:$0x1] %vm969, %v968
    // Predicated region
    $region66: #{tpu_custom_call.1} parent=1 // pred_check
      _
    $region67: #{tpu_custom_call.1} parent=1 // pred_check_branch
      %973 = sbr.rel (0) target = $region69
    $region68: #{tpu_custom_call.1} parent=1 // pred_region
      %s975 = ssub.s32 32, 32
      %976 = vsyncadd [#allocation5], %s975
      %s977 = sshll.u32 [#allocation6], 4
      %s978 = int_to_ptr.vmem [resolvable:$true] %s977
      %983 = dma.vmem_to_hbm [thread:$0]  %s978, 32, %s15, [#allocation5], 16, 16, 1
    $region69: #{tpu_custom_call.1} parent=1 // pred_fallthru
      _
    // Predicated region
    $region70: #{tpu_custom_call.1} parent=1 // pred_check
      _
    $region71: #{tpu_custom_call.1} parent=1 // pred_check_branch
      %985 = sbr.rel (0) target = $region73
    $region72: #{tpu_custom_call.1} parent=1 // pred_region
      %986 = dma.done [#allocation5], 32
    $region73: #{tpu_custom_call.1} parent=1 // pred_fallthru
      _
    %987 = vsyncpa [#allocation4], 1
    %988 = vsyncpa [#allocation5], 1

</llo_original>
